<compile_context>
chip_gen: v6e
topology: v6e:2x2x1
jax: 0.10.0
libtpu: 0.0.40
codegen_flags: <defaults>
</compile_context>

<pallas_src>
import math
import functools

import jax
import jax.numpy as jnp
from jax.experimental import pallas as pl
from jax.experimental.pallas import tpu as pltpu


# ----------------------------------------------------------------------------
# Kernels
# ----------------------------------------------------------------------------
def _layer_norm(x, w, b, eps=1e-5):
    """PyTorch nn.LayerNorm semantics (biased variance, eps inside sqrt), f32."""
    mu = jnp.mean(x, axis=-1, keepdims=True)
    xc = x - mu
    var = jnp.mean(xc * xc, axis=-1, keepdims=True)
    return xc * jax.lax.rsqrt(var + eps) * w + b


def encoder_kernel(
    emb_ref,   # (Bt, S, D)  f32   token embeddings (gathered in the wrapper)
    pe_ref,    # (Bt, 1, D)  f32   positional-encoding row(s) for this batch tile
    wqkv_ref,  # (1, D, 3D)  bf16  in_proj weight^T, Q columns pre-scaled
    wo_ref,    # (1, D, D)   bf16  out_proj weight^T
    w1_ref,    # (1, D, H)   bf16  linear1 weight^T
    w2_ref,    # (1, H, D)   bf16  linear2 weight^T
    bqkv_ref,  # (1, 1, 3D)  f32   in_proj bias (Q part pre-scaled)
    b1_ref,    # (1, 1, H)   f32   linear1 bias
    dvec_ref,  # (1, 6, D)   f32   packed [bo, ln1w, ln1b, b2, ln2w, ln2b]
    out_ref,   # (Bt, S, D)  f32   encoded activations (written on last layer)
    x_scr,     # (Bt*S, D)   f32   VMEM residual stream carried across layers
    *, nhead,
):
    layer = pl.program_id(1)
    nlayers = pl.num_programs(1)

    Bt, S, D = emb_ref.shape
    M = Bt * S
    hd = D // nhead

    # ---- layer 0: fused embedding scale + positional encoding --------------
    @pl.when(layer == 0)
    def _():
        # emb * sqrt(d_model) + pe[batch]  (PE broadcast over the sequence,
        # faithful to the reference's pe[:x.size(0)] quirk with batch_first).
        x0 = emb_ref[...] * math.sqrt(D) + pe_ref[...]
        x_scr[...] = x0.reshape(M, D)

    x = x_scr[...]                                  # (M, D) f32 residual stream
    xb = x.astype(jnp.bfloat16)

    # ---- fused QKV projection over all rows (attn scale folded into Wq) -----
    qkv = jnp.dot(xb, wqkv_ref[0],
                  preferred_element_type=jnp.float32) + bqkv_ref[0]    # (M, 3D)

    dv = dvec_ref[0]                                # (6, D) f32
    bo, ln1w, ln1b = dv[0:1], dv[1:2], dv[2:3]
    b2, ln2w, ln2b = dv[3:4], dv[4:5], dv[5:6]

    # ---- multi-head self-attention (bf16 MXU ops, f32 softmax) ---------------
    # TODO(synk): batch the heads into a single 4-D einsum / 128-lane groups to
    #             remove the per-head lane slices at non-128 offsets.
    heads = []
    for h in range(nhead):
        lo, hi = h * hd, (h + 1) * hd
        qh = qkv[:, 0 * D + lo:0 * D + hi].reshape(Bt, S, hd).astype(jnp.bfloat16)
        kh = qkv[:, 1 * D + lo:1 * D + hi].reshape(Bt, S, hd).astype(jnp.bfloat16)
        vh = qkv[:, 2 * D + lo:2 * D + hi].reshape(Bt, S, hd).astype(jnp.bfloat16)

        s = jnp.einsum('bqd,bkd->bqk', qh, kh,
                       preferred_element_type=jnp.float32)             # (Bt,S,S)
        s = s - jnp.max(s, axis=-1, keepdims=True)
        p = jnp.exp(s)
        inv_l = pl.reciprocal(jnp.sum(p, axis=-1, keepdims=True), approx=True)
        oh = jnp.einsum('bqk,bkd->bqd', p.astype(jnp.bfloat16), vh,
                        preferred_element_type=jnp.float32) * inv_l    # (Bt,S,hd)
        heads.append(oh)

    # Concatenate heads, then ONE full-K output projection (fills the MXU).
    attn_in = jnp.concatenate(heads, axis=-1).reshape(M, D).astype(jnp.bfloat16)
    attn = jnp.dot(attn_in, wo_ref[0],
                   preferred_element_type=jnp.float32) + bo            # (M, D)

    # ---- residual + LayerNorm1 (f32) ----------------------------------------
    y = _layer_norm(x + attn, ln1w, ln1b)

    # ---- feed-forward: linear1 -> relu(bf16) -> linear2 ----------------------
    h1 = jnp.dot(y.astype(jnp.bfloat16), w1_ref[0],
                 preferred_element_type=jnp.float32) + b1_ref[0]
    h1 = jnp.maximum(h1, 0.0).astype(jnp.bfloat16)
    h2 = jnp.dot(h1, w2_ref[0], preferred_element_type=jnp.float32) + b2

    # ---- residual + LayerNorm2; store for the next layer ---------------------
    z = _layer_norm(y + h2, ln2w, ln2b)
    x_scr[...] = z

    # ---- last layer: emit encoded activations --------------------------------
    @pl.when(layer == nlayers - 1)
    def _():
        out_ref[...] = z.reshape(Bt, S, D)


def decoder_kernel(x_ref, wd_ref, bd_ref, out_ref):
    # (TM, D) @ (D, TN) + (1, TN), bf16 MXU with f32 accumulation.
    out_ref[...] = (jnp.dot(x_ref[...].astype(jnp.bfloat16), wd_ref[...],
                            preferred_element_type=jnp.float32)
                    + bd_ref[...])


# ----------------------------------------------------------------------------
# Wrapper: encoder pallas_call (layer loop) + decoder pallas_call
# ----------------------------------------------------------------------------
def transformer_forward(params, src):
    B, S = src.shape
    D = params['d_model']
    V = params['ntoken']
    L = params['nlayers']
    H = params['b1'].shape[-1]
    Vp = params['wd_t'].shape[-1]
    nhead = params['nhead']
    M = B * S
    VMEM_LIMIT = 48 * 1024 * 1024   # headroom below v7x's 64 MiB physical VMEM

    # Embedding gather is data-dependent -> done as JAX glue (jnp.take).
    emb = jnp.take(params['emb'], src, axis=0)           # (B, S, D) f32
    pe_b = params['pe'][:B]                               # (B, 1, D) f32

    # One batch row per tile: attention never mixes batch rows, so the batch
    # axis is a safe "parallel" grid axis (2nd TensorCore on v7x).
    BT = 1
    NB = B // BT

    bmap = lambda b, l: (b, 0, 0)                         # per-batch-tile blocks
    lmap = lambda b, l: (l, 0, 0)                         # per-layer stacked blocks

    enc = pl.pallas_call(
        functools.partial(encoder_kernel, nhead=nhead),
        out_shape=jax.ShapeDtypeStruct((B, S, D), jnp.float32),
        grid=(NB, L),
        in_specs=[
            pl.BlockSpec((BT, S, D), bmap),        # emb
            pl.BlockSpec((BT, 1, D), bmap),        # pe rows
            pl.BlockSpec((1, D, 3 * D), lmap),     # wqkv_t   (bf16)
            pl.BlockSpec((1, D, D), lmap),         # wo_t     (bf16)
            pl.BlockSpec((1, D, H), lmap),         # w1_t     (bf16)
            pl.BlockSpec((1, H, D), lmap),         # w2_t     (bf16)
            pl.BlockSpec((1, 1, 3 * D), lmap),     # bqkv
            pl.BlockSpec((1, 1, H), lmap),         # b1
            pl.BlockSpec((1, 6, D), lmap),         # packed bias / LN vectors
        ],
        out_specs=pl.BlockSpec((BT, S, D), bmap),
        scratch_shapes=[pltpu.VMEM((BT * S, D), jnp.float32)],
        compiler_params=pltpu.CompilerParams(
            dimension_semantics=("parallel", "arbitrary"),
            vmem_limit_bytes=VMEM_LIMIT),
    )(emb, pe_b,
      params['wqkv_t'], params['wo_t'], params['w1_t'], params['w2_t'],
      params['bqkv'], params['b1'], params['dvec'])

    # ---- decoder: its own pallas_call, tiled over (rows, padded vocab) -------
    x2 = enc.reshape(M, D)
    TM = 256 if (M % 256 == 0) else M
    TN = 512 if (Vp % 512 == 0) else Vp

    logits_p = pl.pallas_call(
        decoder_kernel,
        out_shape=jax.ShapeDtypeStruct((M, Vp), jnp.float32),
        grid=(M // TM, Vp // TN),
        in_specs=[
            pl.BlockSpec((TM, D), lambda i, j: (i, 0)),
            pl.BlockSpec((D, TN), lambda i, j: (0, j)),
            pl.BlockSpec((1, TN), lambda i, j: (0, j)),
        ],
        out_specs=pl.BlockSpec((TM, TN), lambda i, j: (i, j)),
        compiler_params=pltpu.CompilerParams(
            dimension_semantics=("parallel", "parallel"),
            vmem_limit_bytes=VMEM_LIMIT),
    )(x2, params['wd_t'], params['bd'])

    return logits_p[:, :V].reshape(B, S, V)


# ----------------------------------------------------------------------------
# Parameters (deterministic; shapes follow the PyTorch __init__)
# ----------------------------------------------------------------------------
def make_pe(max_len, d_model):
    position = jnp.arange(max_len, dtype=jnp.float32)[:, None]
    div_term = jnp.exp(jnp.arange(0, d_model, 2, dtype=jnp.float32)
                       * (-math.log(10000.0) / d_model))
    pe = jnp.zeros((max_len, 1, d_model), jnp.float32)
    pe = pe.at[:, 0, 0::2].set(jnp.sin(position * div_term))
    pe = pe.at[:, 0, 1::2].set(jnp.cos(position * div_term))
    return pe


def init_params(key, ntoken, d_model, nhead, d_hid, nlayers):
    initrange = 0.1
    keys = jax.random.split(key, 2 + nlayers * 6)

    def u(k, shape, r=initrange):
        return jax.random.uniform(k, shape, jnp.float32, -r, r)

    # Pad the vocab up to a lane-dense multiple of 128 for the decoder output.
    vpad = ((ntoken + 127) // 128) * 128
    wd = u(keys[1], (ntoken, d_model))                                # (V, D)
    wd_t = jnp.zeros((d_model, vpad), jnp.float32).at[:, :ntoken].set(wd.T)
    bd = jnp.zeros((1, vpad), jnp.float32)

    attn_scale = 1.0 / math.sqrt(d_model // nhead)

    wqkv, wo, w1, w2 = [], [], [], []
    bqkv, b1, dvec = [], [], []
    ki = 2
    for _ in range(nlayers):
        k_qkv, k_qkvb, k_o, k_1, k_1b, k_2 = keys[ki:ki + 6]
        ki += 6
        # in_proj weight (3D, D): rows [0:D] are the Q output features.
        # Fold the attention scale into Q weight rows AND Q bias (one-time
        # host-side pre-scale; equivalent to scaling q after projection).
        w_in = u(k_qkv, (3 * d_model, d_model))
        w_in = w_in.at[:d_model, :].multiply(attn_scale)
        b_in = u(k_qkvb, (1, 3 * d_model))
        b_in = b_in.at[:, :d_model].multiply(attn_scale)
        wqkv.append(w_in.T)                                           # (D, 3D)
        bqkv.append(b_in)
        wo.append(u(k_o, (d_model, d_model)).T)                       # (D, D)
        w1.append(u(k_1, (d_hid, d_model)).T)                         # (D, H)
        b1.append(u(k_1b, (1, d_hid)))
        w2.append(u(k_2, (d_model, d_hid)).T)                         # (H, D)
        dvec.append(jnp.concatenate([
            jnp.zeros((1, d_model), jnp.float32),   # out_proj bias
            jnp.ones((1, d_model), jnp.float32),    # ln1 weight
            jnp.zeros((1, d_model), jnp.float32),   # ln1 bias
            jnp.zeros((1, d_model), jnp.float32),   # linear2 bias
            jnp.ones((1, d_model), jnp.float32),    # ln2 weight
            jnp.zeros((1, d_model), jnp.float32),   # ln2 bias
        ], axis=0))                                                   # (6, D)

    return {
        'nhead': nhead, 'd_model': d_model, 'ntoken': ntoken, 'nlayers': nlayers,
        'emb': u(keys[0], (ntoken, d_model)),                         # nn.Embedding weight
        'pe': make_pe(1000, d_model),                                 # PE buffer
        # matmul weights in bf16 (f32 accumulation inside the kernel)
        'wqkv_t': jnp.stack(wqkv).astype(jnp.bfloat16),               # (L, D, 3D)
        'wo_t': jnp.stack(wo).astype(jnp.bfloat16),                   # (L, D, D)
        'w1_t': jnp.stack(w1).astype(jnp.bfloat16),                   # (L, D, H)
        'w2_t': jnp.stack(w2).astype(jnp.bfloat16),                   # (L, H, D)
        'bqkv': jnp.stack(bqkv),                                      # (L, 1, 3D) f32
        'b1': jnp.stack(b1),                                          # (L, 1, H)  f32
        'dvec': jnp.stack(dvec),                                      # (L, 6, D)  f32
        'wd_t': wd_t.astype(jnp.bfloat16),                            # (D, Vp) bf16
        'bd': bd,                                                     # (1, Vp) f32
    }


if __name__ == "__main__":
    ntoken, d_model, nhead, d_hid, nlayers = 50, 32, 4, 64, 2
    B, S = 2, 8

    key = jax.random.PRNGKey(0)
    pkey, dkey = jax.random.split(key)
    params = init_params(pkey, ntoken, d_model, nhead, d_hid, nlayers)
    src = jax.random.randint(dkey, (B, S), 0, ntoken, dtype=jnp.int32)

    out = transformer_forward(params, src)
    out = jax.block_until_ready(out)
    assert out.shape == (B, S, ntoken), out.shape
    assert bool(jnp.all(jnp.isfinite(out)))
    print("KERNEL_OK")
</pallas_src>

<mosaic_0001>
module attributes {stable_mosaic.version = 11 : i64} {
  func.func @encoder_kernel(%arg0: i32, %arg1: i32, %arg2: memref<1x8x32xf32, #tpu.memory_space<vmem>>, %arg3: memref<1x1x32xf32, #tpu.memory_space<vmem>>, %arg4: memref<1x32x96xbf16, #tpu.memory_space<vmem>>, %arg5: memref<1x32x32xbf16, #tpu.memory_space<vmem>>, %arg6: memref<1x32x64xbf16, #tpu.memory_space<vmem>>, %arg7: memref<1x64x32xbf16, #tpu.memory_space<vmem>>, %arg8: memref<1x1x96xf32, #tpu.memory_space<vmem>>, %arg9: memref<1x1x64xf32, #tpu.memory_space<vmem>>, %arg10: memref<1x6x32xf32, #tpu.memory_space<vmem>>, %arg11: memref<1x8x32xf32, #tpu.memory_space<vmem>>, %arg12: memref<8x32xf32, #tpu.memory_space<vmem>>) attributes {dimension_semantics = [#tpu.dimension_semantics<parallel>, #tpu.dimension_semantics<arbitrary>], iteration_bounds = array<i64: 2, 2>, scalar_prefetch = 0 : i64, scratch_operands = 1 : i64, tpu.core_type = #tpu.core_type<tc>, window_params = [{transform_indices = @transform_0, window_bounds = array<i64: 1, 8, 32>}, {transform_indices = @transform_1, window_bounds = array<i64: 1, 1, 32>}, {transform_indices = @transform_2, window_bounds = array<i64: 1, 32, 96>}, {transform_indices = @transform_3, window_bounds = array<i64: 1, 32, 32>}, {transform_indices = @transform_4, window_bounds = array<i64: 1, 32, 64>}, {transform_indices = @transform_5, window_bounds = array<i64: 1, 64, 32>}, {transform_indices = @transform_6, window_bounds = array<i64: 1, 1, 96>}, {transform_indices = @transform_7, window_bounds = array<i64: 1, 1, 64>}, {transform_indices = @transform_8, window_bounds = array<i64: 1, 6, 32>}, {transform_indices = @transform_9, window_bounds = array<i64: 1, 8, 32>}]} {
    %c0_i32 = arith.constant 0 : i32
    %0 = arith.cmpi eq, %arg1, %c0_i32 : i32
    %1 = arith.extui %0 : i1 to i32
    %c0_i32_0 = arith.constant 0 : i32
    %2 = arith.cmpi ne, %1, %c0_i32_0 : i32
    scf.if %2 {
      %c0_56 = arith.constant 0 : index
      %c0_57 = arith.constant 0 : index
      %c0_58 = arith.constant 0 : index
      %178 = vector.load %arg2[%c0_56, %c0_57, %c0_58] : memref<1x8x32xf32, #tpu.memory_space<vmem>>, vector<1x8x32xf32>
      %cst_59 = arith.constant 5.65685415 : f32
      %179 = vector.broadcast %cst_59 : f32 to vector<1x8x32xf32>
      %180 = arith.mulf %178, %179 : vector<1x8x32xf32>
      %c0_60 = arith.constant 0 : index
      %c0_61 = arith.constant 0 : index
      %c0_62 = arith.constant 0 : index
      %181 = vector.load %arg3[%c0_60, %c0_61, %c0_62] : memref<1x1x32xf32, #tpu.memory_space<vmem>>, vector<1x1x32xf32>
      %182 = vector.broadcast %181 : vector<1x1x32xf32> to vector<1x8x32xf32>
      %183 = arith.addf %180, %182 : vector<1x8x32xf32>
      %184 = vector.shape_cast %183 : vector<1x8x32xf32> to vector<8x32xf32>
      %c0_63 = arith.constant 0 : index
      %c0_64 = arith.constant 0 : index
      %185 = vector.load %arg12[%c0_63, %c0_64] : memref<8x32xf32, #tpu.memory_space<vmem>>, vector<8x32xf32>
      tpu.vector_store %arg12[%c0_63, %c0_64], %184 {strides = array<i32>} : memref<8x32xf32, #tpu.memory_space<vmem>>, vector<8x32xf32>,
    } else {
    }
    %c0 = arith.constant 0 : index
    %c0_1 = arith.constant 0 : index
    %3 = vector.load %arg12[%c0, %c0_1] : memref<8x32xf32, #tpu.memory_space<vmem>>, vector<8x32xf32>
    %4 = arith.truncf %3 : vector<8x32xf32> to vector<8x32xbf16>
    %c0_2 = arith.constant 0 : index
    %c0_3 = arith.constant 0 : index
    %c0_4 = arith.constant 0 : index
    %5 = vector.load %arg4[%c0_2, %c0_3, %c0_4] : memref<1x32x96xbf16, #tpu.memory_space<vmem>>, vector<1x32x96xbf16>
    %6 = vector.shape_cast %5 : vector<1x32x96xbf16> to vector<32x96xbf16>
    %cst = arith.constant dense<0.000000e+00> : vector<8x96xf32>
    %7 = tpu.matmul %4, %6, %cst {dimension_numbers = #tpu.dot_dimension_numbers<[1], [0], [0], [1], [0, 0, 1, 1], [], []>} : vector<8x32xbf16>, vector<32x96xbf16>, vector<8x96xf32> -> vector<8x96xf32>
    %c0_5 = arith.constant 0 : index
    %c0_6 = arith.constant 0 : index
    %c0_7 = arith.constant 0 : index
    %8 = vector.load %arg8[%c0_5, %c0_6, %c0_7] : memref<1x1x96xf32, #tpu.memory_space<vmem>>, vector<1x1x96xf32>
    %9 = vector.shape_cast %8 : vector<1x1x96xf32> to vector<1x96xf32>
    %10 = vector.broadcast %9 : vector<1x96xf32> to vector<8x96xf32>
    %11 = arith.addf %7, %10 : vector<8x96xf32>
    %c0_8 = arith.constant 0 : index
    %c0_9 = arith.constant 0 : index
    %c0_10 = arith.constant 0 : index
    %12 = vector.load %arg10[%c0_8, %c0_9, %c0_10] : memref<1x6x32xf32, #tpu.memory_space<vmem>>, vector<1x6x32xf32>
    %13 = vector.shape_cast %12 : vector<1x6x32xf32> to vector<6x32xf32>
    %14 = vector.extract_strided_slice %13 {offsets = [0, 0], sizes = [1, 32], strides = [1, 1]} : vector<6x32xf32> to vector<1x32xf32>
    %15 = vector.extract_strided_slice %13 {offsets = [1, 0], sizes = [1, 32], strides = [1, 1]} : vector<6x32xf32> to vector<1x32xf32>
    %16 = vector.extract_strided_slice %13 {offsets = [2, 0], sizes = [1, 32], strides = [1, 1]} : vector<6x32xf32> to vector<1x32xf32>
    %17 = vector.extract_strided_slice %13 {offsets = [3, 0], sizes = [1, 32], strides = [1, 1]} : vector<6x32xf32> to vector<1x32xf32>
    %18 = vector.extract_strided_slice %13 {offsets = [4, 0], sizes = [1, 32], strides = [1, 1]} : vector<6x32xf32> to vector<1x32xf32>
    %19 = vector.extract_strided_slice %13 {offsets = [5, 0], sizes = [1, 32], strides = [1, 1]} : vector<6x32xf32> to vector<1x32xf32>
    %20 = vector.extract_strided_slice %11 {offsets = [0, 0], sizes = [8, 8], strides = [1, 1]} : vector<8x96xf32> to vector<8x8xf32>
    %21 = vector.shape_cast %20 : vector<8x8xf32> to vector<1x8x8xf32>
    %22 = arith.truncf %21 : vector<1x8x8xf32> to vector<1x8x8xbf16>
    %23 = vector.extract_strided_slice %11 {offsets = [0, 32], sizes = [8, 8], strides = [1, 1]} : vector<8x96xf32> to vector<8x8xf32>
    %24 = vector.shape_cast %23 : vector<8x8xf32> to vector<1x8x8xf32>
    %25 = arith.truncf %24 : vector<1x8x8xf32> to vector<1x8x8xbf16>
    %26 = vector.extract_strided_slice %11 {offsets = [0, 64], sizes = [8, 8], strides = [1, 1]} : vector<8x96xf32> to vector<8x8xf32>
    %27 = vector.shape_cast %26 : vector<8x8xf32> to vector<1x8x8xf32>
    %28 = arith.truncf %27 : vector<1x8x8xf32> to vector<1x8x8xbf16>
    "tpu.trace_start"() <{level = 10 : i32, message = "bqd,bkd->bqk"}> : () -> ()
    %cst_11 = arith.constant dense<0.000000e+00> : vector<1x8x8xf32>
    %29 = tpu.matmul %22, %25, %cst_11 {dimension_numbers = #tpu.dot_dimension_numbers<[2], [2], [1], [1], [0, 0, 0, 1, 1, 1], [0], [0]>} : vector<1x8x8xbf16>, vector<1x8x8xbf16>, vector<1x8x8xf32> -> vector<1x8x8xf32>
    "tpu.trace_stop"() : () -> ()
    %cst_12 = arith.constant dense<0xFF800000> : vector<1x8xf32>
    %30 = vector.multi_reduction <maximumf>, %29, %cst_12 [2] : vector<1x8x8xf32> to vector<1x8xf32>
    %31 = vector.shape_cast %30 : vector<1x8xf32> to vector<1x8x1xf32>
    %32 = vector.broadcast %31 : vector<1x8x1xf32> to vector<1x8x8xf32>
    %33 = arith.subf %29, %32 : vector<1x8x8xf32>
    %34 = math.exp %33 : vector<1x8x8xf32>
    %cst_13 = arith.constant dense<0.000000e+00> : vector<1x8xf32>
    %35 = vector.multi_reduction <add>, %34, %cst_13 [2] : vector<1x8x8xf32> to vector<1x8xf32>
    %36 = vector.shape_cast %35 : vector<1x8xf32> to vector<1x8x1xf32>
    %37 = tpu.reciprocal %36 {approx = true} : vector<1x8x1xf32> -> vector<1x8x1xf32>
    %38 = arith.truncf %34 : vector<1x8x8xf32> to vector<1x8x8xbf16>
    "tpu.trace_start"() <{level = 10 : i32, message = "bqk,bkd->bqd"}> : () -> ()
    %cst_14 = arith.constant dense<0.000000e+00> : vector<1x8x8xf32>
    %39 = tpu.matmul %38, %28, %cst_14 {dimension_numbers = #tpu.dot_dimension_numbers<[2], [1], [1], [2], [0, 0, 0, 1, 1, 2], [0], [0]>} : vector<1x8x8xbf16>, vector<1x8x8xbf16>, vector<1x8x8xf32> -> vector<1x8x8xf32>
    "tpu.trace_stop"() : () -> ()
    %40 = vector.broadcast %37 : vector<1x8x1xf32> to vector<1x8x8xf32>
    %41 = arith.mulf %39, %40 : vector<1x8x8xf32>
    %42 = vector.extract_strided_slice %11 {offsets = [0, 8], sizes = [8, 8], strides = [1, 1]} : vector<8x96xf32> to vector<8x8xf32>
    %43 = vector.shape_cast %42 : vector<8x8xf32> to vector<1x8x8xf32>
    %44 = arith.truncf %43 : vector<1x8x8xf32> to vector<1x8x8xbf16>
    %45 = vector.extract_strided_slice %11 {offsets = [0, 40], sizes = [8, 8], strides = [1, 1]} : vector<8x96xf32> to vector<8x8xf32>
    %46 = vector.shape_cast %45 : vector<8x8xf32> to vector<1x8x8xf32>
    %47 = arith.truncf %46 : vector<1x8x8xf32> to vector<1x8x8xbf16>
    %48 = vector.extract_strided_slice %11 {offsets = [0, 72], sizes = [8, 8], strides = [1, 1]} : vector<8x96xf32> to vector<8x8xf32>
    %49 = vector.shape_cast %48 : vector<8x8xf32> to vector<1x8x8xf32>
    %50 = arith.truncf %49 : vector<1x8x8xf32> to vector<1x8x8xbf16>
    "tpu.trace_start"() <{level = 10 : i32, message = "bqd,bkd->bqk"}> : () -> ()
    %cst_15 = arith.constant dense<0.000000e+00> : vector<1x8x8xf32>
    %51 = tpu.matmul %44, %47, %cst_15 {dimension_numbers = #tpu.dot_dimension_numbers<[2], [2], [1], [1], [0, 0, 0, 1, 1, 1], [0], [0]>} : vector<1x8x8xbf16>, vector<1x8x8xbf16>, vector<1x8x8xf32> -> vector<1x8x8xf32>
    "tpu.trace_stop"() : () -> ()
    %cst_16 = arith.constant dense<0xFF800000> : vector<1x8xf32>
    %52 = vector.multi_reduction <maximumf>, %51, %cst_16 [2] : vector<1x8x8xf32> to vector<1x8xf32>
    %53 = vector.shape_cast %52 : vector<1x8xf32> to vector<1x8x1xf32>
    %54 = vector.broadcast %53 : vector<1x8x1xf32> to vector<1x8x8xf32>
    %55 = arith.subf %51, %54 : vector<1x8x8xf32>
    %56 = math.exp %55 : vector<1x8x8xf32>
    %cst_17 = arith.constant dense<0.000000e+00> : vector<1x8xf32>
    %57 = vector.multi_reduction <add>, %56, %cst_17 [2] : vector<1x8x8xf32> to vector<1x8xf32>
    %58 = vector.shape_cast %57 : vector<1x8xf32> to vector<1x8x1xf32>
    %59 = tpu.reciprocal %58 {approx = true} : vector<1x8x1xf32> -> vector<1x8x1xf32>
    %60 = arith.truncf %56 : vector<1x8x8xf32> to vector<1x8x8xbf16>
    "tpu.trace_start"() <{level = 10 : i32, message = "bqk,bkd->bqd"}> : () -> ()
    %cst_18 = arith.constant dense<0.000000e+00> : vector<1x8x8xf32>
    %61 = tpu.matmul %60, %50, %cst_18 {dimension_numbers = #tpu.dot_dimension_numbers<[2], [1], [1], [2], [0, 0, 0, 1, 1, 2], [0], [0]>} : vector<1x8x8xbf16>, vector<1x8x8xbf16>, vector<1x8x8xf32> -> vector<1x8x8xf32>
    "tpu.trace_stop"() : () -> ()
    %62 = vector.broadcast %59 : vector<1x8x1xf32> to vector<1x8x8xf32>
    %63 = arith.mulf %61, %62 : vector<1x8x8xf32>
    %64 = vector.extract_strided_slice %11 {offsets = [0, 16], sizes = [8, 8], strides = [1, 1]} : vector<8x96xf32> to vector<8x8xf32>
    %65 = vector.shape_cast %64 : vector<8x8xf32> to vector<1x8x8xf32>
    %66 = arith.truncf %65 : vector<1x8x8xf32> to vector<1x8x8xbf16>
    %67 = vector.extract_strided_slice %11 {offsets = [0, 48], sizes = [8, 8], strides = [1, 1]} : vector<8x96xf32> to vector<8x8xf32>
    %68 = vector.shape_cast %67 : vector<8x8xf32> to vector<1x8x8xf32>
    %69 = arith.truncf %68 : vector<1x8x8xf32> to vector<1x8x8xbf16>
    %70 = vector.extract_strided_slice %11 {offsets = [0, 80], sizes = [8, 8], strides = [1, 1]} : vector<8x96xf32> to vector<8x8xf32>
    %71 = vector.shape_cast %70 : vector<8x8xf32> to vector<1x8x8xf32>
    %72 = arith.truncf %71 : vector<1x8x8xf32> to vector<1x8x8xbf16>
    "tpu.trace_start"() <{level = 10 : i32, message = "bqd,bkd->bqk"}> : () -> ()
    %cst_19 = arith.constant dense<0.000000e+00> : vector<1x8x8xf32>
    %73 = tpu.matmul %66, %69, %cst_19 {dimension_numbers = #tpu.dot_dimension_numbers<[2], [2], [1], [1], [0, 0, 0, 1, 1, 1], [0], [0]>} : vector<1x8x8xbf16>, vector<1x8x8xbf16>, vector<1x8x8xf32> -> vector<1x8x8xf32>
    "tpu.trace_stop"() : () -> ()
    %cst_20 = arith.constant dense<0xFF800000> : vector<1x8xf32>
    %74 = vector.multi_reduction <maximumf>, %73, %cst_20 [2] : vector<1x8x8xf32> to vector<1x8xf32>
    %75 = vector.shape_cast %74 : vector<1x8xf32> to vector<1x8x1xf32>
    %76 = vector.broadcast %75 : vector<1x8x1xf32> to vector<1x8x8xf32>
    %77 = arith.subf %73, %76 : vector<1x8x8xf32>
    %78 = math.exp %77 : vector<1x8x8xf32>
    %cst_21 = arith.constant dense<0.000000e+00> : vector<1x8xf32>
    %79 = vector.multi_reduction <add>, %78, %cst_21 [2] : vector<1x8x8xf32> to vector<1x8xf32>
    %80 = vector.shape_cast %79 : vector<1x8xf32> to vector<1x8x1xf32>
    %81 = tpu.reciprocal %80 {approx = true} : vector<1x8x1xf32> -> vector<1x8x1xf32>
    %82 = arith.truncf %78 : vector<1x8x8xf32> to vector<1x8x8xbf16>
    "tpu.trace_start"() <{level = 10 : i32, message = "bqk,bkd->bqd"}> : () -> ()
    %cst_22 = arith.constant dense<0.000000e+00> : vector<1x8x8xf32>
    %83 = tpu.matmul %82, %72, %cst_22 {dimension_numbers = #tpu.dot_dimension_numbers<[2], [1], [1], [2], [0, 0, 0, 1, 1, 2], [0], [0]>} : vector<1x8x8xbf16>, vector<1x8x8xbf16>, vector<1x8x8xf32> -> vector<1x8x8xf32>
    "tpu.trace_stop"() : () -> ()
    %84 = vector.broadcast %81 : vector<1x8x1xf32> to vector<1x8x8xf32>
    %85 = arith.mulf %83, %84 : vector<1x8x8xf32>
    %86 = vector.extract_strided_slice %11 {offsets = [0, 24], sizes = [8, 8], strides = [1, 1]} : vector<8x96xf32> to vector<8x8xf32>
    %87 = vector.shape_cast %86 : vector<8x8xf32> to vector<1x8x8xf32>
    %88 = arith.truncf %87 : vector<1x8x8xf32> to vector<1x8x8xbf16>
    %89 = vector.extract_strided_slice %11 {offsets = [0, 56], sizes = [8, 8], strides = [1, 1]} : vector<8x96xf32> to vector<8x8xf32>
    %90 = vector.shape_cast %89 : vector<8x8xf32> to vector<1x8x8xf32>
    %91 = arith.truncf %90 : vector<1x8x8xf32> to vector<1x8x8xbf16>
    %92 = vector.extract_strided_slice %11 {offsets = [0, 88], sizes = [8, 8], strides = [1, 1]} : vector<8x96xf32> to vector<8x8xf32>
    %93 = vector.shape_cast %92 : vector<8x8xf32> to vector<1x8x8xf32>
    %94 = arith.truncf %93 : vector<1x8x8xf32> to vector<1x8x8xbf16>
    "tpu.trace_start"() <{level = 10 : i32, message = "bqd,bkd->bqk"}> : () -> ()
    %cst_23 = arith.constant dense<0.000000e+00> : vector<1x8x8xf32>
    %95 = tpu.matmul %88, %91, %cst_23 {dimension_numbers = #tpu.dot_dimension_numbers<[2], [2], [1], [1], [0, 0, 0, 1, 1, 1], [0], [0]>} : vector<1x8x8xbf16>, vector<1x8x8xbf16>, vector<1x8x8xf32> -> vector<1x8x8xf32>
    "tpu.trace_stop"() : () -> ()
    %cst_24 = arith.constant dense<0xFF800000> : vector<1x8xf32>
    %96 = vector.multi_reduction <maximumf>, %95, %cst_24 [2] : vector<1x8x8xf32> to vector<1x8xf32>
    %97 = vector.shape_cast %96 : vector<1x8xf32> to vector<1x8x1xf32>
    %98 = vector.broadcast %97 : vector<1x8x1xf32> to vector<1x8x8xf32>
    %99 = arith.subf %95, %98 : vector<1x8x8xf32>
    %100 = math.exp %99 : vector<1x8x8xf32>
    %cst_25 = arith.constant dense<0.000000e+00> : vector<1x8xf32>
    %101 = vector.multi_reduction <add>, %100, %cst_25 [2] : vector<1x8x8xf32> to vector<1x8xf32>
    %102 = vector.shape_cast %101 : vector<1x8xf32> to vector<1x8x1xf32>
    %103 = tpu.reciprocal %102 {approx = true} : vector<1x8x1xf32> -> vector<1x8x1xf32>
    %104 = arith.truncf %100 : vector<1x8x8xf32> to vector<1x8x8xbf16>
    "tpu.trace_start"() <{level = 10 : i32, message = "bqk,bkd->bqd"}> : () -> ()
    %cst_26 = arith.constant dense<0.000000e+00> : vector<1x8x8xf32>
    %105 = tpu.matmul %104, %94, %cst_26 {dimension_numbers = #tpu.dot_dimension_numbers<[2], [1], [1], [2], [0, 0, 0, 1, 1, 2], [0], [0]>} : vector<1x8x8xbf16>, vector<1x8x8xbf16>, vector<1x8x8xf32> -> vector<1x8x8xf32>
    "tpu.trace_stop"() : () -> ()
    %106 = vector.broadcast %103 : vector<1x8x1xf32> to vector<1x8x8xf32>
    %107 = arith.mulf %105, %106 : vector<1x8x8xf32>
    %108 = tpu.concatenate %41, %63, %85, %107 in 2 : vector<1x8x8xf32>, vector<1x8x8xf32>, vector<1x8x8xf32>, vector<1x8x8xf32> -> vector<1x8x32xf32>
    %109 = vector.shape_cast %108 : vector<1x8x32xf32> to vector<8x32xf32>
    %110 = arith.truncf %109 : vector<8x32xf32> to vector<8x32xbf16>
    %c0_27 = arith.constant 0 : index
    %c0_28 = arith.constant 0 : index
    %c0_29 = arith.constant 0 : index
    %111 = vector.load %arg5[%c0_27, %c0_28, %c0_29] : memref<1x32x32xbf16, #tpu.memory_space<vmem>>, vector<1x32x32xbf16>
    %112 = vector.shape_cast %111 : vector<1x32x32xbf16> to vector<32x32xbf16>
    %cst_30 = arith.constant dense<0.000000e+00> : vector<8x32xf32>
    %113 = tpu.matmul %110, %112, %cst_30 {dimension_numbers = #tpu.dot_dimension_numbers<[1], [0], [0], [1], [0, 0, 1, 1], [], []>} : vector<8x32xbf16>, vector<32x32xbf16>, vector<8x32xf32> -> vector<8x32xf32>
    %114 = vector.broadcast %14 : vector<1x32xf32> to vector<8x32xf32>
    %115 = arith.addf %113, %114 : vector<8x32xf32>
    %116 = arith.addf %3, %115 : vector<8x32xf32>
    %cst_31 = arith.constant dense<0.000000e+00> : vector<8xf32>
    %117 = vector.multi_reduction <add>, %116, %cst_31 [1] : vector<8x32xf32> to vector<8xf32>
    %118 = vector.shape_cast %117 : vector<8xf32> to vector<8x1xf32>
    %cst_32 = arith.constant 3.200000e+01 : f32
    %119 = vector.broadcast %cst_32 : f32 to vector<8x1xf32>
    %120 = arith.divf %118, %119 : vector<8x1xf32>
    %121 = vector.broadcast %120 : vector<8x1xf32> to vector<8x32xf32>
    %122 = arith.subf %116, %121 : vector<8x32xf32>
    %123 = arith.mulf %122, %122 : vector<8x32xf32>
    %cst_33 = arith.constant dense<0.000000e+00> : vector<8xf32>
    %124 = vector.multi_reduction <add>, %123, %cst_33 [1] : vector<8x32xf32> to vector<8xf32>
    %125 = vector.shape_cast %124 : vector<8xf32> to vector<8x1xf32>
    %cst_34 = arith.constant 3.200000e+01 : f32
    %126 = vector.broadcast %cst_34 : f32 to vector<8x1xf32>
    %127 = arith.divf %125, %126 : vector<8x1xf32>
    %cst_35 = arith.constant 9.99999974E-6 : f32
    %128 = vector.broadcast %cst_35 : f32 to vector<8x1xf32>
    %129 = arith.addf %127, %128 : vector<8x1xf32>
    %130 = math.rsqrt %129 : vector<8x1xf32>
    %131 = vector.broadcast %130 : vector<8x1xf32> to vector<8x32xf32>
    %132 = arith.mulf %122, %131 : vector<8x32xf32>
    %133 = vector.broadcast %15 : vector<1x32xf32> to vector<8x32xf32>
    %134 = arith.mulf %132, %133 : vector<8x32xf32>
    %135 = vector.broadcast %16 : vector<1x32xf32> to vector<8x32xf32>
    %136 = arith.addf %134, %135 : vector<8x32xf32>
    %137 = arith.truncf %136 : vector<8x32xf32> to vector<8x32xbf16>
    %c0_36 = arith.constant 0 : index
    %c0_37 = arith.constant 0 : index
    %c0_38 = arith.constant 0 : index
    %138 = vector.load %arg6[%c0_36, %c0_37, %c0_38] : memref<1x32x64xbf16, #tpu.memory_space<vmem>>, vector<1x32x64xbf16>
    %139 = vector.shape_cast %138 : vector<1x32x64xbf16> to vector<32x64xbf16>
    %cst_39 = arith.constant dense<0.000000e+00> : vector<8x64xf32>
    %140 = tpu.matmul %137, %139, %cst_39 {dimension_numbers = #tpu.dot_dimension_numbers<[1], [0], [0], [1], [0, 0, 1, 1], [], []>} : vector<8x32xbf16>, vector<32x64xbf16>, vector<8x64xf32> -> vector<8x64xf32>
    %c0_40 = arith.constant 0 : index
    %c0_41 = arith.constant 0 : index
    %c0_42 = arith.constant 0 : index
    %141 = vector.load %arg9[%c0_40, %c0_41, %c0_42] : memref<1x1x64xf32, #tpu.memory_space<vmem>>, vector<1x1x64xf32>
    %142 = vector.shape_cast %141 : vector<1x1x64xf32> to vector<1x64xf32>
    %143 = vector.broadcast %142 : vector<1x64xf32> to vector<8x64xf32>
    %144 = arith.addf %140, %143 : vector<8x64xf32>
    %cst_43 = arith.constant 0.000000e+00 : f32
    %145 = vector.broadcast %cst_43 : f32 to vector<8x64xf32>
    %146 = arith.maximumf %144, %145 : vector<8x64xf32>
    %147 = arith.truncf %146 : vector<8x64xf32> to vector<8x64xbf16>
    %c0_44 = arith.constant 0 : index
    %c0_45 = arith.constant 0 : index
    %c0_46 = arith.constant 0 : index
    %148 = vector.load %arg7[%c0_44, %c0_45, %c0_46] : memref<1x64x32xbf16, #tpu.memory_space<vmem>>, vector<1x64x32xbf16>
    %149 = vector.shape_cast %148 : vector<1x64x32xbf16> to vector<64x32xbf16>
    %cst_47 = arith.constant dense<0.000000e+00> : vector<8x32xf32>
    %150 = tpu.matmul %147, %149, %cst_47 {dimension_numbers = #tpu.dot_dimension_numbers<[1], [0], [0], [1], [0, 0, 1, 1], [], []>} : vector<8x64xbf16>, vector<64x32xbf16>, vector<8x32xf32> -> vector<8x32xf32>
    %151 = vector.broadcast %17 : vector<1x32xf32> to vector<8x32xf32>
    %152 = arith.addf %150, %151 : vector<8x32xf32>
    %153 = arith.addf %136, %152 : vector<8x32xf32>
    %cst_48 = arith.constant dense<0.000000e+00> : vector<8xf32>
    %154 = vector.multi_reduction <add>, %153, %cst_48 [1] : vector<8x32xf32> to vector<8xf32>
    %155 = vector.shape_cast %154 : vector<8xf32> to vector<8x1xf32>
    %cst_49 = arith.constant 3.200000e+01 : f32
    %156 = vector.broadcast %cst_49 : f32 to vector<8x1xf32>
    %157 = arith.divf %155, %156 : vector<8x1xf32>
    %158 = vector.broadcast %157 : vector<8x1xf32> to vector<8x32xf32>
    %159 = arith.subf %153, %158 : vector<8x32xf32>
    %160 = arith.mulf %159, %159 : vector<8x32xf32>
    %cst_50 = arith.constant dense<0.000000e+00> : vector<8xf32>
    %161 = vector.multi_reduction <add>, %160, %cst_50 [1] : vector<8x32xf32> to vector<8xf32>
    %162 = vector.shape_cast %161 : vector<8xf32> to vector<8x1xf32>
    %cst_51 = arith.constant 3.200000e+01 : f32
    %163 = vector.broadcast %cst_51 : f32 to vector<8x1xf32>
    %164 = arith.divf %162, %163 : vector<8x1xf32>
    %cst_52 = arith.constant 9.99999974E-6 : f32
    %165 = vector.broadcast %cst_52 : f32 to vector<8x1xf32>
    %166 = arith.addf %164, %165 : vector<8x1xf32>
    %167 = math.rsqrt %166 : vector<8x1xf32>
    %168 = vector.broadcast %167 : vector<8x1xf32> to vector<8x32xf32>
    %169 = arith.mulf %159, %168 : vector<8x32xf32>
    %170 = vector.broadcast %18 : vector<1x32xf32> to vector<8x32xf32>
    %171 = arith.mulf %169, %170 : vector<8x32xf32>
    %172 = vector.broadcast %19 : vector<1x32xf32> to vector<8x32xf32>
    %173 = arith.addf %171, %172 : vector<8x32xf32>
    %c0_53 = arith.constant 0 : index
    %c0_54 = arith.constant 0 : index
    %174 = vector.load %arg12[%c0_53, %c0_54] : memref<8x32xf32, #tpu.memory_space<vmem>>, vector<8x32xf32>
    tpu.vector_store %arg12[%c0_53, %c0_54], %173 {strides = array<i32>} : memref<8x32xf32, #tpu.memory_space<vmem>>, vector<8x32xf32>,
    %c1_i32 = arith.constant 1 : i32
    %175 = arith.cmpi eq, %arg1, %c1_i32 : i32
    %176 = arith.extui %175 : i1 to i32
    %c0_i32_55 = arith.constant 0 : i32
    %177 = arith.cmpi ne, %176, %c0_i32_55 : i32
    scf.if %177 {
      %178 = vector.shape_cast %173 : vector<8x32xf32> to vector<1x8x32xf32>
      %c0_56 = arith.constant 0 : index
      %c0_57 = arith.constant 0 : index
      %c0_58 = arith.constant 0 : index
      %179 = vector.load %arg11[%c0_56, %c0_57, %c0_58] : memref<1x8x32xf32, #tpu.memory_space<vmem>>, vector<1x8x32xf32>
      tpu.vector_store %arg11[%c0_56, %c0_57, %c0_58], %178 {strides = array<i32>} : memref<1x8x32xf32, #tpu.memory_space<vmem>>, vector<1x8x32xf32>,
    } else {
    }
    return
  }
  func.func @transform_0(%arg0: i32, %arg1: i32) -> (i32, i32, i32) {
    %c0_i32 = arith.constant 0 : i32
    %c0_i32_0 = arith.constant 0 : i32
    %c0_i32_1 = arith.constant 0 : i32
    return %arg0, %c0_i32, %c0_i32_0 : i32, i32, i32
  }
  func.func @transform_1(%arg0: i32, %arg1: i32) -> (i32, i32, i32) {
    %c0_i32 = arith.constant 0 : i32
    %c0_i32_0 = arith.constant 0 : i32
    %c0_i32_1 = arith.constant 0 : i32
    return %arg0, %c0_i32, %c0_i32_0 : i32, i32, i32
  }
  func.func @transform_2(%arg0: i32, %arg1: i32) -> (i32, i32, i32) {
    %c0_i32 = arith.constant 0 : i32
    %c0_i32_0 = arith.constant 0 : i32
    %c0_i32_1 = arith.constant 0 : i32
    return %arg1, %c0_i32, %c0_i32_0 : i32, i32, i32
  }
  func.func @transform_3(%arg0: i32, %arg1: i32) -> (i32, i32, i32) {
    %c0_i32 = arith.constant 0 : i32
    %c0_i32_0 = arith.constant 0 : i32
    %c0_i32_1 = arith.constant 0 : i32
    return %arg1, %c0_i32, %c0_i32_0 : i32, i32, i32
  }
  func.func @transform_4(%arg0: i32, %arg1: i32) -> (i32, i32, i32) {
    %c0_i32 = arith.constant 0 : i32
    %c0_i32_0 = arith.constant 0 : i32
    %c0_i32_1 = arith.constant 0 : i32
    return %arg1, %c0_i32, %c0_i32_0 : i32, i32, i32
  }
  func.func @transform_5(%arg0: i32, %arg1: i32) -> (i32, i32, i32) {
    %c0_i32 = arith.constant 0 : i32
    %c0_i32_0 = arith.constant 0 : i32
    %c0_i32_1 = arith.constant 0 : i32
    return %arg1, %c0_i32, %c0_i32_0 : i32, i32, i32
  }
  func.func @transform_6(%arg0: i32, %arg1: i32) -> (i32, i32, i32) {
    %c0_i32 = arith.constant 0 : i32
    %c0_i32_0 = arith.constant 0 : i32
    %c0_i32_1 = arith.constant 0 : i32
    return %arg1, %c0_i32, %c0_i32_0 : i32, i32, i32
  }
  func.func @transform_7(%arg0: i32, %arg1: i32) -> (i32, i32, i32) {
    %c0_i32 = arith.constant 0 : i32
    %c0_i32_0 = arith.constant 0 : i32
    %c0_i32_1 = arith.constant 0 : i32
    return %arg1, %c0_i32, %c0_i32_0 : i32, i32, i32
  }
  func.func @transform_8(%arg0: i32, %arg1: i32) -> (i32, i32, i32) {
    %c0_i32 = arith.constant 0 : i32
    %c0_i32_0 = arith.constant 0 : i32
    %c0_i32_1 = arith.constant 0 : i32
    return %arg1, %c0_i32, %c0_i32_0 : i32, i32, i32
  }
  func.func @transform_9(%arg0: i32, %arg1: i32) -> (i32, i32, i32) {
    %c0_i32 = arith.constant 0 : i32
    %c0_i32_0 = arith.constant 0 : i32
    %c0_i32_1 = arith.constant 0 : i32
    return %arg0, %c0_i32, %c0_i32_0 : i32, i32, i32
  }
}

</mosaic_0001>

<llo_original>
// kernel: tpu_custom_call.1
$region0: #{tpu_custom_call.1}
  #allocation0 [shape = 'u32[]', space=smem, size = 0x4, offset = 0x4, fixed_abs, tag = 'smem constant byte address 0x4 - core index']
  #allocation1 [shape = 'u32[144,128]{1,0:T(1,128)}', space=vmem, size = 0x12000, scoped, tag = 'internal scratch']
  #allocation2 [shape = 'f32[8,32]{1,0:T(8,128)}', space=vmem, size = 0x1000, scoped, tag = 'scratch operand']
  %s0 = inlined_call_operand.hbm [shape: f32[2,8,32], index: 0, kind: input, shape index: {}]
  %s1 = inlined_call_operand.vmem [shape: f32[2,1,32], index: 1, kind: input, shape index: {}]
  %s2 = inlined_call_operand.vmem [shape: bf16[2,32,96], index: 2, kind: input, shape index: {}]
  %s3 = inlined_call_operand.vmem [shape: bf16[2,32,32], index: 3, kind: input, shape index: {}]
  %s4 = inlined_call_operand.vmem [shape: bf16[2,32,64], index: 4, kind: input, shape index: {}]
  %s5 = inlined_call_operand.vmem [shape: bf16[2,64,32], index: 5, kind: input, shape index: {}]
  %s6 = inlined_call_operand.vmem [shape: f32[2,1,96], index: 6, kind: input, shape index: {}]
  %s7 = inlined_call_operand.vmem [shape: f32[2,1,64], index: 7, kind: input, shape index: {}]
  %s8 = inlined_call_operand.vmem [shape: f32[2,6,32], index: 8, kind: input, shape index: {}]
  %s9 = inlined_call_operand.hbm [shape: f32[2,8,32], index: 9, kind: output, shape index: {}]
  %s10 = sld [smem:[#allocation0]]
  $region81: #{tpu_custom_call.1} parent=0
    _
  %s12 = ssub.s32 1, %s10
  %s13 = scalar_select 0, %s12, %s10
  $region1: #{tpu_custom_call.1} parent=0
    #allocation3 [shape = 'u8[8192]{0}', space=vmem, size = 0x2000, scoped, tag = 'input window, operand 0']
    #allocation4 [shape = 's32[2]{0}', space=sflag, size = 0x8, scoped, tag = 'scoped memory for tpu_custom_call.1']
    #allocation5 [shape = 's32[2]{0}', space=sflag, size = 0x8, scoped, tag = 'scoped memory for tpu_custom_call.1']
    #allocation6 [shape = 'u8[8192]{0}', space=vmem, size = 0x2000, scoped, tag = 'output window, operand 0']
    %14 = vsyncpa [#allocation4], 0
    %s15 = scalar_lea.sflag [#allocation4], 1
    %16 = vsyncpa %s15, 0
    %17 = vsyncpa [#allocation5], 0
    %s18 = scalar_lea.sflag [#allocation5], 1
    %19 = vsyncpa %s18, 0
    loop: start=0, step=1, limit=6
    $region2: #{tpu_custom_call.1} parent=1 // loop_pre_header
      _
    $region3: #{tpu_custom_call.1} parent=1 // loop_header
      %s21 = sphi 0, %s25
      %p22 = scmp.ge.s32.totalorder %s21, 6
      %s28 = sphi 0, %s40
      %s29 = sphi 0, %s36
      %s30 = sphi 0, %s28
      %s31 = sphi 0, %s29
      %s32 = sphi 0, %s30
      %s33 = sphi 0, %s31
      %s43 = sphi 0, %s45
      %s46 = sphi 0, %s43
      %s47 = sphi 0, %s46
      %s63 = sphi 0, %s47
      %s69 = sphi 0, %s71
      %s72 = sphi 0, %s69
      %s73 = sphi 0, %s72
      %s89 = sphi 0, %s73
      %s95 = sphi 0, %s97
      %s98 = sphi 0, %s95
      %s99 = sphi 0, %s98
      %s115 = sphi 0, %s99
      %s121 = sphi 0, %s123
      %s124 = sphi 0, %s121
      %s125 = sphi 0, %s124
      %s141 = sphi 0, %s125
      %s147 = sphi 0, %s149
      %s150 = sphi 0, %s147
      %s151 = sphi 0, %s150
      %s167 = sphi 0, %s151
      %s173 = sphi 0, %s175
      %s176 = sphi 0, %s173
      %s177 = sphi 0, %s176
      %s193 = sphi 0, %s177
      %s199 = sphi 0, %s201
      %s202 = sphi 0, %s199
      %s203 = sphi 0, %s202
      %s219 = sphi 0, %s203
      %s225 = sphi 0, %s227
      %s228 = sphi 0, %s225
      %s229 = sphi 0, %s228
      %s245 = sphi 0, %s229
      %s251 = sphi 0, %s253
      %s254 = sphi 0, %s251
      %s255 = sphi 0, %s254
      %s271 = sphi 0, %s255
      %s277 = sphi 0, %s279
      %s280 = sphi 0, %s277
      %s281 = sphi 0, %s280
      %s297 = sphi 0, %s281
    $region4: #{tpu_custom_call.1} parent=1 // loop_header_branch
      %24 = sbr.rel (%p22) target = $region8
    $region5: #{tpu_custom_call.1} parent=1 // loop_body
      %s26 = ssub.s32 %s21, 1
      %s27 = ssub.s32 %s21, 2
      %s34 = sadd.s32 1, %s29
      %p35 = scmp.ge.s32.totalorder %s34, 2
      %s36 = scalar_select %p35, 0, %s34
      %s37 = sadd.s32 1, %s28
      %s38 = scalar_select %p35, %s37, %s28
      %p39 = scmp.ge.s32.totalorder %s38, 2
      %s40 = scalar_select %p39, 0, %s38
      %s41 = ssub.s32 %s28, %s40
      %p42 = scmp.eq.s32.totalorder %s41, 0
      %s44 = sadd.s32 %s43, 1
      %s45 = scalar_select %p42, %s43, %s44
      %p48 = pneg %p42
      %p49 = scmp.eq.s32.totalorder %s21, 3
      %p50 = por %p48, %p49
      %p51 = scmp.ne.s32.totalorder %s43, %s46
      %p52 = scmp.eq.s32.totalorder %s21, 0
      %p53 = por %p51, %p52
      %p54 = scmp.ne.s32.totalorder %s43, %s46
      %p55 = scmp.eq.s32.totalorder %s26, 3
      %p56 = por %p54, %p55
      %p57 = scmp.ne.s32.totalorder %s46, %s47
      %p58 = scmp.eq.s32.totalorder %s26, 0
      %p59 = por %p57, %p58
      %p60 = scmp.ne.s32.totalorder %s46, %s47
      %p61 = scmp.eq.s32.totalorder %s27, 3
      %p62 = por %p60, %p61
      %p64 = scmp.ne.s32.totalorder %s47, %s63
      %p65 = scmp.eq.s32.totalorder %s27, 0
      %p66 = por %p64, %p65
      %s67 = ssub.s32 %s28, %s40
      %p68 = scmp.eq.s32.totalorder %s67, 0
      %s70 = sadd.s32 %s69, 1
      %s71 = scalar_select %p68, %s69, %s70
      %p74 = pneg %p68
      %p75 = scmp.eq.s32.totalorder %s21, 3
      %p76 = por %p74, %p75
      %p77 = scmp.ne.s32.totalorder %s69, %s72
      %p78 = scmp.eq.s32.totalorder %s21, 0
      %p79 = por %p77, %p78
      %p80 = scmp.ne.s32.totalorder %s69, %s72
      %p81 = scmp.eq.s32.totalorder %s26, 3
      %p82 = por %p80, %p81
      %p83 = scmp.ne.s32.totalorder %s72, %s73
      %p84 = scmp.eq.s32.totalorder %s26, 0
      %p85 = por %p83, %p84
      %p86 = scmp.ne.s32.totalorder %s72, %s73
      %p87 = scmp.eq.s32.totalorder %s27, 3
      %p88 = por %p86, %p87
      %p90 = scmp.ne.s32.totalorder %s73, %s89
      %p91 = scmp.eq.s32.totalorder %s27, 0
      %p92 = por %p90, %p91
      %s93 = ssub.s32 %s29, %s36
      %p94 = scmp.eq.s32.totalorder %s93, 0
      %s96 = sadd.s32 %s95, 1
      %s97 = scalar_select %p94, %s95, %s96
      %p100 = pneg %p94
      %p101 = scmp.eq.s32.totalorder %s21, 3
      %p102 = por %p100, %p101
      %p103 = scmp.ne.s32.totalorder %s95, %s98
      %p104 = scmp.eq.s32.totalorder %s21, 0
      %p105 = por %p103, %p104
      %p106 = scmp.ne.s32.totalorder %s95, %s98
      %p107 = scmp.eq.s32.totalorder %s26, 3
      %p108 = por %p106, %p107
      %p109 = scmp.ne.s32.totalorder %s98, %s99
      %p110 = scmp.eq.s32.totalorder %s26, 0
      %p111 = por %p109, %p110
      %p112 = scmp.ne.s32.totalorder %s98, %s99
      %p113 = scmp.eq.s32.totalorder %s27, 3
      %p114 = por %p112, %p113
      %p116 = scmp.ne.s32.totalorder %s99, %s115
      %p117 = scmp.eq.s32.totalorder %s27, 0
      %p118 = por %p116, %p117
      %s119 = ssub.s32 %s29, %s36
      %p120 = scmp.eq.s32.totalorder %s119, 0
      %s122 = sadd.s32 %s121, 1
      %s123 = scalar_select %p120, %s121, %s122
      %p126 = pneg %p120
      %p127 = scmp.eq.s32.totalorder %s21, 3
      %p128 = por %p126, %p127
      %p129 = scmp.ne.s32.totalorder %s121, %s124
      %p130 = scmp.eq.s32.totalorder %s21, 0
      %p131 = por %p129, %p130
      %p132 = scmp.ne.s32.totalorder %s121, %s124
      %p133 = scmp.eq.s32.totalorder %s26, 3
      %p134 = por %p132, %p133
      %p135 = scmp.ne.s32.totalorder %s124, %s125
      %p136 = scmp.eq.s32.totalorder %s26, 0
      %p137 = por %p135, %p136
      %p138 = scmp.ne.s32.totalorder %s124, %s125
      %p139 = scmp.eq.s32.totalorder %s27, 3
      %p140 = por %p138, %p139
      %p142 = scmp.ne.s32.totalorder %s125, %s141
      %p143 = scmp.eq.s32.totalorder %s27, 0
      %p144 = por %p142, %p143
      %s145 = ssub.s32 %s29, %s36
      %p146 = scmp.eq.s32.totalorder %s145, 0
      %s148 = sadd.s32 %s147, 1
      %s149 = scalar_select %p146, %s147, %s148
      %p152 = pneg %p146
      %p153 = scmp.eq.s32.totalorder %s21, 3
      %p154 = por %p152, %p153
      %p155 = scmp.ne.s32.totalorder %s147, %s150
      %p156 = scmp.eq.s32.totalorder %s21, 0
      %p157 = por %p155, %p156
      %p158 = scmp.ne.s32.totalorder %s147, %s150
      %p159 = scmp.eq.s32.totalorder %s26, 3
      %p160 = por %p158, %p159
      %p161 = scmp.ne.s32.totalorder %s150, %s151
      %p162 = scmp.eq.s32.totalorder %s26, 0
      %p163 = por %p161, %p162
      %p164 = scmp.ne.s32.totalorder %s150, %s151
      %p165 = scmp.eq.s32.totalorder %s27, 3
      %p166 = por %p164, %p165
      %p168 = scmp.ne.s32.totalorder %s151, %s167
      %p169 = scmp.eq.s32.totalorder %s27, 0
      %p170 = por %p168, %p169
      %s171 = ssub.s32 %s29, %s36
      %p172 = scmp.eq.s32.totalorder %s171, 0
      %s174 = sadd.s32 %s173, 1
      %s175 = scalar_select %p172, %s173, %s174
      %p178 = pneg %p172
      %p179 = scmp.eq.s32.totalorder %s21, 3
      %p180 = por %p178, %p179
      %p181 = scmp.ne.s32.totalorder %s173, %s176
      %p182 = scmp.eq.s32.totalorder %s21, 0
      %p183 = por %p181, %p182
      %p184 = scmp.ne.s32.totalorder %s173, %s176
      %p185 = scmp.eq.s32.totalorder %s26, 3
      %p186 = por %p184, %p185
      %p187 = scmp.ne.s32.totalorder %s176, %s177
      %p188 = scmp.eq.s32.totalorder %s26, 0
      %p189 = por %p187, %p188
      %p190 = scmp.ne.s32.totalorder %s176, %s177
      %p191 = scmp.eq.s32.totalorder %s27, 3
      %p192 = por %p190, %p191
      %p194 = scmp.ne.s32.totalorder %s177, %s193
      %p195 = scmp.eq.s32.totalorder %s27, 0
      %p196 = por %p194, %p195
      %s197 = ssub.s32 %s29, %s36
      %p198 = scmp.eq.s32.totalorder %s197, 0
      %s200 = sadd.s32 %s199, 1
      %s201 = scalar_select %p198, %s199, %s200
      %p204 = pneg %p198
      %p205 = scmp.eq.s32.totalorder %s21, 3
      %p206 = por %p204, %p205
      %p207 = scmp.ne.s32.totalorder %s199, %s202
      %p208 = scmp.eq.s32.totalorder %s21, 0
      %p209 = por %p207, %p208
      %p210 = scmp.ne.s32.totalorder %s199, %s202
      %p211 = scmp.eq.s32.totalorder %s26, 3
      %p212 = por %p210, %p211
      %p213 = scmp.ne.s32.totalorder %s202, %s203
      %p214 = scmp.eq.s32.totalorder %s26, 0
      %p215 = por %p213, %p214
      %p216 = scmp.ne.s32.totalorder %s202, %s203
      %p217 = scmp.eq.s32.totalorder %s27, 3
      %p218 = por %p216, %p217
      %p220 = scmp.ne.s32.totalorder %s203, %s219
      %p221 = scmp.eq.s32.totalorder %s27, 0
      %p222 = por %p220, %p221
      %s223 = ssub.s32 %s29, %s36
      %p224 = scmp.eq.s32.totalorder %s223, 0
      %s226 = sadd.s32 %s225, 1
      %s227 = scalar_select %p224, %s225, %s226
      %p230 = pneg %p224
      %p231 = scmp.eq.s32.totalorder %s21, 3
      %p232 = por %p230, %p231
      %p233 = scmp.ne.s32.totalorder %s225, %s228
      %p234 = scmp.eq.s32.totalorder %s21, 0
      %p235 = por %p233, %p234
      %p236 = scmp.ne.s32.totalorder %s225, %s228
      %p237 = scmp.eq.s32.totalorder %s26, 3
      %p238 = por %p236, %p237
      %p239 = scmp.ne.s32.totalorder %s228, %s229
      %p240 = scmp.eq.s32.totalorder %s26, 0
      %p241 = por %p239, %p240
      %p242 = scmp.ne.s32.totalorder %s228, %s229
      %p243 = scmp.eq.s32.totalorder %s27, 3
      %p244 = por %p242, %p243
      %p246 = scmp.ne.s32.totalorder %s229, %s245
      %p247 = scmp.eq.s32.totalorder %s27, 0
      %p248 = por %p246, %p247
      %s249 = ssub.s32 %s29, %s36
      %p250 = scmp.eq.s32.totalorder %s249, 0
      %s252 = sadd.s32 %s251, 1
      %s253 = scalar_select %p250, %s251, %s252
      %p256 = pneg %p250
      %p257 = scmp.eq.s32.totalorder %s21, 3
      %p258 = por %p256, %p257
      %p259 = scmp.ne.s32.totalorder %s251, %s254
      %p260 = scmp.eq.s32.totalorder %s21, 0
      %p261 = por %p259, %p260
      %p262 = scmp.ne.s32.totalorder %s251, %s254
      %p263 = scmp.eq.s32.totalorder %s26, 3
      %p264 = por %p262, %p263
      %p265 = scmp.ne.s32.totalorder %s254, %s255
      %p266 = scmp.eq.s32.totalorder %s26, 0
      %p267 = por %p265, %p266
      %p268 = scmp.ne.s32.totalorder %s254, %s255
      %p269 = scmp.eq.s32.totalorder %s27, 3
      %p270 = por %p268, %p269
      %p272 = scmp.ne.s32.totalorder %s255, %s271
      %p273 = scmp.eq.s32.totalorder %s27, 0
      %p274 = por %p272, %p273
      %s275 = ssub.s32 %s28, %s40
      %p276 = scmp.eq.s32.totalorder %s275, 0
      %s278 = sadd.s32 %s277, 1
      %s279 = scalar_select %p276, %s277, %s278
      %p282 = pneg %p276
      %p283 = scmp.eq.s32.totalorder %s21, 3
      %p284 = por %p282, %p283
      %p285 = scmp.ne.s32.totalorder %s277, %s280
      %p286 = scmp.eq.s32.totalorder %s21, 0
      %p287 = por %p285, %p286
      %p288 = scmp.ne.s32.totalorder %s277, %s280
      %p289 = scmp.eq.s32.totalorder %s26, 3
      %p290 = por %p288, %p289
      %p291 = scmp.ne.s32.totalorder %s280, %s281
      %p292 = scmp.eq.s32.totalorder %s26, 0
      %p293 = por %p291, %p292
      %p294 = scmp.ne.s32.totalorder %s280, %s281
      %p295 = scmp.eq.s32.totalorder %s27, 3
      %p296 = por %p294, %p295
      %p298 = scmp.ne.s32.totalorder %s281, %s297
      %p299 = scmp.eq.s32.totalorder %s27, 0
      %p300 = por %p298, %p299
      %p301 = scmp.le.s32.totalorder 1, %s21
      %p302 = scmp.lt.s32.totalorder %s21, 5
      %p303 = pnand %p301, %p302
      %p304 = pneg %p303
      // Predicated region
      $region9: #{tpu_custom_call.1} parent=5 // pred_check
        _
      $region10: #{tpu_custom_call.1} parent=5 // pred_check_branch
        %306 = sbr.rel (%p303) target = $region12
      $region11: #{tpu_custom_call.1} parent=5 // pred_region
        %s307 = ssub.s32 %s21, 1
      $region12: #{tpu_custom_call.1} parent=5 // pred_fallthru
        _
      %p308 = scmp.lt.s32.totalorder %s21, 4
      // Predicated region
      $region13: #{tpu_custom_call.1} parent=5 // pred_check
        %p309 = pneg %p308
      $region14: #{tpu_custom_call.1} parent=5 // pred_check_branch
        %311 = sbr.rel (%p309) target = $region16
      $region15: #{tpu_custom_call.1} parent=5 // pred_region
        // Predicated region
        $region17: #{tpu_custom_call.1} parent=15 // pred_check
          %p312 = pneg %p53
        $region18: #{tpu_custom_call.1} parent=15 // pred_check_branch
          %314 = sbr.rel (%p312) target = $region20
        $region19: #{tpu_custom_call.1} parent=15 // pred_region
          %s315 = sand.u32 %s43, 1
          %s316 = scalar_lea.sflag [#allocation4], %s315
          %s317 = sand.u32 %s43, 1
          %s318 = smul.addr %s317, 8
          %s319 = scalar_lea.vmem [#allocation3], %s318
          %s321 = ssub.s32 128, 128
          %322 = vsyncadd %s316, %s321
          %s323 = smul.addr %s28, 128
          %s324 = scalar_lea.hbm %s0, %s323
          %s326 = sshll.u32 %s319, 4
          %s327 = int_to_ptr.vmem [resolvable:$true] %s326
          %329 = dma.hbm_to_vmem [thread:$0]  %s324, 128, %s327, %s316
        $region20: #{tpu_custom_call.1} parent=15 // pred_fallthru
          _
        // Predicated region
        $region21: #{tpu_custom_call.1} parent=15 // pred_check
          %p330 = pneg %p79
        $region22: #{tpu_custom_call.1} parent=15 // pred_check_branch
          %332 = sbr.rel (%p330) target = $region24
        $region23: #{tpu_custom_call.1} parent=15 // pred_region
          %p333 = scmp.lt.s32.totalorder %s28, 1
          %s334 = scalar_select %p333, %s28, 1
          %s335 = scalar_lea.vmem %s1, %s334
        $region24: #{tpu_custom_call.1} parent=15 // pred_fallthru
          _
        // Predicated region
        $region25: #{tpu_custom_call.1} parent=15 // pred_check
          %p336 = pneg %p105
        $region26: #{tpu_custom_call.1} parent=15 // pred_check_branch
          %338 = sbr.rel (%p336) target = $region28
        $region27: #{tpu_custom_call.1} parent=15 // pred_region
          %p339 = scmp.lt.s32.totalorder %s29, 1
          %s340 = scalar_select %p339, %s29, 1
          %s341 = smul.addr %s340, 4
          %s342 = smul.addr %s341, 4
          %s343 = scalar_lea.vmem %s2, %s342
        $region28: #{tpu_custom_call.1} parent=15 // pred_fallthru
          _
        // Predicated region
        $region29: #{tpu_custom_call.1} parent=15 // pred_check
          %p344 = pneg %p131
        $region30: #{tpu_custom_call.1} parent=15 // pred_check_branch
          %346 = sbr.rel (%p344) target = $region32
        $region31: #{tpu_custom_call.1} parent=15 // pred_region
          %p347 = scmp.lt.s32.totalorder %s29, 1
          %s348 = scalar_select %p347, %s29, 1
          %s349 = smul.addr %s348, 4
          %s350 = smul.addr %s349, 4
          %s351 = scalar_lea.vmem %s3, %s350
        $region32: #{tpu_custom_call.1} parent=15 // pred_fallthru
          _
        // Predicated region
        $region33: #{tpu_custom_call.1} parent=15 // pred_check
          %p352 = pneg %p157
        $region34: #{tpu_custom_call.1} parent=15 // pred_check_branch
          %354 = sbr.rel (%p352) target = $region36
        $region35: #{tpu_custom_call.1} parent=15 // pred_region
          %p355 = scmp.lt.s32.totalorder %s29, 1
          %s356 = scalar_select %p355, %s29, 1
          %s357 = smul.addr %s356, 4
          %s358 = smul.addr %s357, 4
          %s359 = scalar_lea.vmem %s4, %s358
        $region36: #{tpu_custom_call.1} parent=15 // pred_fallthru
          _
        // Predicated region
        $region37: #{tpu_custom_call.1} parent=15 // pred_check
          %p360 = pneg %p183
        $region38: #{tpu_custom_call.1} parent=15 // pred_check_branch
          %362 = sbr.rel (%p360) target = $region40
        $region39: #{tpu_custom_call.1} parent=15 // pred_region
          %p363 = scmp.lt.s32.totalorder %s29, 1
          %s364 = scalar_select %p363, %s29, 1
          %s365 = smul.addr %s364, 8
          %s366 = smul.addr %s365, 4
          %s367 = scalar_lea.vmem %s5, %s366
        $region40: #{tpu_custom_call.1} parent=15 // pred_fallthru
          _
        // Predicated region
        $region41: #{tpu_custom_call.1} parent=15 // pred_check
          %p368 = pneg %p209
        $region42: #{tpu_custom_call.1} parent=15 // pred_check_branch
          %370 = sbr.rel (%p368) target = $region44
        $region43: #{tpu_custom_call.1} parent=15 // pred_region
          %p371 = scmp.lt.s32.totalorder %s29, 1
          %s372 = scalar_select %p371, %s29, 1
          %s373 = scalar_lea.vmem %s6, %s372
        $region44: #{tpu_custom_call.1} parent=15 // pred_fallthru
          _
        // Predicated region
        $region45: #{tpu_custom_call.1} parent=15 // pred_check
          %p374 = pneg %p235
        $region46: #{tpu_custom_call.1} parent=15 // pred_check_branch
          %376 = sbr.rel (%p374) target = $region48
        $region47: #{tpu_custom_call.1} parent=15 // pred_region
          %p377 = scmp.lt.s32.totalorder %s29, 1
          %s378 = scalar_select %p377, %s29, 1
          %s379 = scalar_lea.vmem %s7, %s378
        $region48: #{tpu_custom_call.1} parent=15 // pred_fallthru
          _
        // Predicated region
        $region49: #{tpu_custom_call.1} parent=15 // pred_check
          %p380 = pneg %p261
        $region50: #{tpu_custom_call.1} parent=15 // pred_check_branch
          %382 = sbr.rel (%p380) target = $region52
        $region51: #{tpu_custom_call.1} parent=15 // pred_region
          %p383 = scmp.lt.s32.totalorder %s29, 1
          %s384 = scalar_select %p383, %s29, 1
          %s385 = smul.addr %s384, 8
          %s386 = scalar_lea.vmem %s8, %s385
        $region52: #{tpu_custom_call.1} parent=15 // pred_fallthru
          _
      $region16: #{tpu_custom_call.1} parent=5 // pred_fallthru
        _
      %p387 = scmp.le.s32.totalorder 1, %s21
      %p388 = scmp.lt.s32.totalorder %s21, 5
      %p389 = pnand %p387, %p388
      %p390 = pneg %p389
      // Predicated region
      $region53: #{tpu_custom_call.1} parent=5 // pred_check
        _
      $region54: #{tpu_custom_call.1} parent=5 // pred_check_branch
        %392 = sbr.rel (%p389) target = $region56
      $region55: #{tpu_custom_call.1} parent=5 // pred_region
        %s393 = ssub.s32 %s21, 1
        %s394 = sand.u32 %s46, 1
        %s395 = scalar_lea.sflag [#allocation4], %s394
        %s396 = sand.u32 %s46, 1
        %s397 = smul.addr %s396, 8
        %s398 = scalar_lea.vmem [#allocation3], %s397
        // Predicated region
        $region57: #{tpu_custom_call.1} parent=55 // pred_check
          %p399 = pneg %p59
        $region58: #{tpu_custom_call.1} parent=55 // pred_check_branch
          %401 = sbr.rel (%p399) target = $region60
        $region59: #{tpu_custom_call.1} parent=55 // pred_region
          %402 = dma.done %s395, 128
        $region60: #{tpu_custom_call.1} parent=55 // pred_fallthru
          _
        %s403 = sand.u32 %s46, 1
        %s404 = scalar_lea.sflag [#allocation4], %s403
        %s405 = sand.u32 %s46, 1
        %s406 = smul.addr %s405, 8
        %s407 = scalar_lea.vmem [#allocation3], %s406
        %p408 = pneg %p59
        %p409 = pneg %p56
        %p410 = scmp.lt.s32.totalorder %s30, 1
        %s411 = scalar_select %p410, %s30, 1
        %s412 = scalar_lea.vmem %s1, %s411
        %p413 = pneg %p85
        %p414 = pneg %p82
        %p415 = scmp.lt.s32.totalorder %s31, 1
        %s416 = scalar_select %p415, %s31, 1
        %s417 = smul.addr %s416, 4
        %s418 = smul.addr %s417, 4
        %s419 = scalar_lea.vmem %s2, %s418
        %p420 = pneg %p111
        %p421 = pneg %p108
        %p422 = scmp.lt.s32.totalorder %s31, 1
        %s423 = scalar_select %p422, %s31, 1
        %s424 = smul.addr %s423, 4
        %s425 = smul.addr %s424, 4
        %s426 = scalar_lea.vmem %s3, %s425
        %p427 = pneg %p137
        %p428 = pneg %p134
        %p429 = scmp.lt.s32.totalorder %s31, 1
        %s430 = scalar_select %p429, %s31, 1
        %s431 = smul.addr %s430, 4
        %s432 = smul.addr %s431, 4
        %s433 = scalar_lea.vmem %s4, %s432
        %p434 = pneg %p163
        %p435 = pneg %p160
        %p436 = scmp.lt.s32.totalorder %s31, 1
        %s437 = scalar_select %p436, %s31, 1
        %s438 = smul.addr %s437, 8
        %s439 = smul.addr %s438, 4
        %s440 = scalar_lea.vmem %s5, %s439
        %p441 = pneg %p189
        %p442 = pneg %p186
        %p443 = scmp.lt.s32.totalorder %s31, 1
        %s444 = scalar_select %p443, %s31, 1
        %s445 = scalar_lea.vmem %s6, %s444
        %p446 = pneg %p215
        %p447 = pneg %p212
        %p448 = scmp.lt.s32.totalorder %s31, 1
        %s449 = scalar_select %p448, %s31, 1
        %s450 = scalar_lea.vmem %s7, %s449
        %p451 = pneg %p241
        %p452 = pneg %p238
        %p453 = scmp.lt.s32.totalorder %s31, 1
        %s454 = scalar_select %p453, %s31, 1
        %s455 = smul.addr %s454, 8
        %s456 = scalar_lea.vmem %s8, %s455
        %p457 = pneg %p267
        %p458 = pneg %p264
        %p459 = pneg %p293
        %p460 = pneg %p290
        %s461 = sand.u32 %s280, 1
        %s462 = scalar_lea.sflag [#allocation5], %s461
        %s463 = sand.u32 %s280, 1
        %s464 = smul.addr %s463, 8
        %s465 = scalar_lea.vmem [#allocation6], %s464
        %p466 = scmp.lt.s32.totalorder %s30, 1
        %s467 = scalar_select %p466, %s30, 1
        %s468 = scalar_lea.vmem %s1, %s467
        %p469 = scmp.lt.s32.totalorder %s31, 1
        %s470 = scalar_select %p469, %s31, 1
        %s471 = smul.addr %s470, 4
        %s472 = smul.addr %s471, 4
        %s473 = scalar_lea.vmem %s2, %s472
        %p474 = scmp.lt.s32.totalorder %s31, 1
        %s475 = scalar_select %p474, %s31, 1
        %s476 = smul.addr %s475, 4
        %s477 = smul.addr %s476, 4
        %s478 = scalar_lea.vmem %s3, %s477
        %p479 = scmp.lt.s32.totalorder %s31, 1
        %s480 = scalar_select %p479, %s31, 1
        %s481 = smul.addr %s480, 4
        %s482 = smul.addr %s481, 4
        %s483 = scalar_lea.vmem %s4, %s482
        %p484 = scmp.lt.s32.totalorder %s31, 1
        %s485 = scalar_select %p484, %s31, 1
        %s486 = smul.addr %s485, 8
        %s487 = smul.addr %s486, 4
        %s488 = scalar_lea.vmem %s5, %s487
        %p489 = scmp.lt.s32.totalorder %s31, 1
        %s490 = scalar_select %p489, %s31, 1
        %s491 = scalar_lea.vmem %s6, %s490
        %p492 = scmp.lt.s32.totalorder %s31, 1
        %s493 = scalar_select %p492, %s31, 1
        %s494 = scalar_lea.vmem %s7, %s493
        %p495 = scmp.lt.s32.totalorder %s31, 1
        %s496 = scalar_select %p495, %s31, 1
        %s497 = smul.addr %s496, 8
        %s498 = scalar_lea.vmem %s8, %s497
        %p500 = scmp.eq.s32.totalorder %s31, 0
        // Predicated region
        $region61: #{tpu_custom_call.1} parent=55 // pred_check
          %p501 = pneg %p500
        $region62: #{tpu_custom_call.1} parent=55 // pred_check_branch
          %503 = sbr.rel (%p501) target = $region64
        $region63: #{tpu_custom_call.1} parent=55 // pred_region
          %v504 = vld [vmem:[%s398] sm:$0xff]
          %v505 = vmul.f32 %v504, 5.656854
          %v506 = vld [vmem:[%s468] sm:$0x1]
          %v508 = vlaneseq
          %v509 = vshrl.u32 %v508, 7
          %v510 = vsub.s32 0, %v509
          %v511 = vrot.slane %v506, %v510
          %v513 = vadd.f32 %v505, %v511
          %vm514 = vcmask 261120
          %515 = vst.msk [vmem:[#allocation2] sm:$0xff] %vm514, %v513
        $region64: #{tpu_custom_call.1} parent=55 // pred_fallthru
          _
        %v516 = vld [vmem:[#allocation2] sm:$0xff]
        %v517 = vpack.c.bf16 %v516, %v516
        %v518 = vld [vmem:[%s473] sm:$0xf]
        %v519 = vld [vmem:[%s473 + $0x4] sm:$0xf]
        %v520 = vld [vmem:[%s473 + $0x8] sm:$0xf]
        %v521 = vld [vmem:[%s473 + $0xc] sm:$0xf]
        %v522 = vld [vmem:[%s491] sm:$0x1]
        %v524 = vlaneseq
        %v525 = vshrl.u32 %v524, 7
        %v526 = vsub.s32 0, %v525
        %v527 = vrot.slane %v522, %v526
        %v533 = vunpack.c.l.b16 %v518
        %v534 = vunpack.c.l.b16 %v519
        %v535 = vunpack.c.l.b16 %v520
        %v536 = vunpack.c.l.b16 %v521
        %v537 = vpack.c.b16 %v534, %v533
        %v538 = vpack.c.b16 %v536, %v535
        %vm541 = vcmask 261120
        %v543 = vsel %vm541, %v517, 0
        %545 = vmatprep.subr.bf16.mxu0 0
        %546 = vmatpush1.bf16.msra.mxu0 0
        %547 = vmatprep.subr.bf16.mxu0 0
        %548 = vmatpush1.bf16.msra.mxu0 0
        %549 = vmatprep.subr.bf16.mxu0 0
        %550 = vmatpush1.bf16.msra.mxu0 0
        %551 = vmatprep.subr.bf16.mxu0 0
        %552 = vmatpush1.bf16.msra.mxu0 0
        %553 = vmatprep.subr.bf16.mxu0 0
        %554 = vmatpush1.bf16.msra.mxu0 0
        %555 = vmatprep.subr.bf16.mxu0 0
        %556 = vmatpush1.bf16.msra.mxu0 0
        %557 = vmatprep.subr.bf16.mxu0 0
        %558 = vmatpush1.bf16.msra.mxu0 %v538
        %559 = vmatprep.subr.bf16.mxu0 0
        %560 = vmatpush1.bf16.msra.mxu0 %v537
        %561 = vmatprep.subr.bf16.mxu0 0
        %562 = vmatpush2.bf16.msra.mxu0 0
        %563 = vmatprep.subr.bf16.mxu0 0
        %564 = vmatpush2.bf16.msra.mxu0 0
        %565 = vmatprep.subr.bf16.mxu0 0
        %566 = vmatpush2.bf16.msra.mxu0 0
        %567 = vmatprep.subr.bf16.mxu0 0
        %568 = vmatpush2.bf16.msra.mxu0 0
        %569 = vmatprep.subr.bf16.mxu0 0
        %570 = vmatpush2.bf16.msra.mxu0 0
        %571 = vmatprep.subr.bf16.mxu0 0
        %572 = vmatpush2.bf16.msra.mxu0 0
        %573 = vmatprep.subr.bf16.mxu0 0
        %574 = vmatpush2.bf16.msra.mxu0 0
        %575 = vmatprep.subr.bf16.mxu0 0
        %576 = vmatpush2.bf16.msra.mxu0 0
        %577 = vmatprep.mubr.bf16.mxu0 0
        %578 = vmatmul.mubr.bf16.gmra.mxu0 %v543
        %v579 = vpop.f32.mrf.mxu0
        %v580 = vadd.f32 %v527, %v579
        %v581 = vpop.f32.mrf.mxu0
        %v582 = vpop.f32.mrf.mxu0
        %v583 = vpop.f32.mrf.mxu0
        %584 = vdwg.mxu0
        %v585 = vld [vmem:[%s498] sm:$0x3f]
        %v586 = vpack.c.bf16 %v580, %v580
        %588 = vrot.lane.b32.xlu0 %v586, 96
        %v589 = vpop.permute.xlu0 %588
        %vm590 = vcmask 64512
        %v592 = vsel %vm590, %v586, 0
        %v595 = vsel %vm590, %v589, 0
        %597 = vmatprep.subr.bf16.mxu0 0
        %598 = vmatpush1.bf16.xpose.msra.mxu0 0
        %599 = vmatprep.subr.bf16.mxu0 0
        %600 = vmatpush1.bf16.xpose.msra.mxu0 0
        %601 = vmatprep.subr.bf16.mxu0 0
        %602 = vmatpush1.bf16.xpose.msra.mxu0 0
        %603 = vmatprep.subr.bf16.mxu0 0
        %604 = vmatpush1.bf16.xpose.msra.mxu0 0
        %605 = vmatprep.subr.bf16.mxu0 0
        %606 = vmatpush1.bf16.xpose.msra.mxu0 0
        %607 = vmatprep.subr.bf16.mxu0 0
        %608 = vmatpush1.bf16.xpose.msra.mxu0 0
        %609 = vmatprep.subr.bf16.mxu0 0
        %610 = vmatpush1.bf16.xpose.msra.mxu0 0
        %611 = vmatprep.subr.bf16.mxu0 0
        %612 = vmatpush1.bf16.xpose.msra.mxu0 %v595
        %613 = vmatprep.subr.bf16.mxu0 0
        %614 = vmatpush2.bf16.xpose.msra.mxu0 0
        %615 = vmatprep.subr.bf16.mxu0 0
        %616 = vmatpush2.bf16.xpose.msra.mxu0 0
        %617 = vmatprep.subr.bf16.mxu0 0
        %618 = vmatpush2.bf16.xpose.msra.mxu0 0
        %619 = vmatprep.subr.bf16.mxu0 0
        %620 = vmatpush2.bf16.xpose.msra.mxu0 0
        %621 = vmatprep.subr.bf16.mxu0 0
        %622 = vmatpush2.bf16.xpose.msra.mxu0 0
        %623 = vmatprep.subr.bf16.mxu0 0
        %624 = vmatpush2.bf16.xpose.msra.mxu0 0
        %625 = vmatprep.subr.bf16.mxu0 0
        %626 = vmatpush2.bf16.xpose.msra.mxu0 0
        %627 = vmatprep.subr.bf16.mxu0 0
        %628 = vmatpush2.bf16.xpose.msra.mxu0 0
        %629 = vmatprep.mubr.bf16.mxu0 0
        %630 = vmatmul.mubr.bf16.gmra.mxu0 %v592
        %v631 = vpop.f32.mrf.mxu0
        %v632 = vadd.f32 0.0, %v631
        %v633 = vpop.f32.mrf.mxu0
        %v634 = vpop.f32.mrf.mxu0
        %v635 = vpop.f32.mrf.mxu0
        %636 = vdwg.mxu0
        %v637 = vsel %vm590, %v632, -inf
        %638 = vmax.xlane.f32.xlu0 %v637
        %v639 = vpop.xlane.xlu0 %638
        %v640 = vsub.f32 %v632, %v639
        %v641 = vmul.f32 %v640, 1.442695
        %v642 = vpow.pop %v641
        %v643 = vsel %vm590, %v642, 0.0
        %644 = vadd.xlane.f32.xlu0 %v643
        %v645 = vpop.xlane.xlu0 %644
        %v646 = vrcp.pop %v645
        %v647 = vpack.c.bf16 %v642, %v642
        %648 = vrot.lane.b32.xlu0 %v586, 64
        %v649 = vpop.permute.xlu0 %648
        %v651 = vsel %vm590, %v647, 0
        %vm653 = vcmask 1043456
        %v655 = vsel %vm653, %v649, 0
        %657 = vmatprep.subr.bf16.mxu0 0
        %658 = vmatpush1.bf16.msra.mxu0 0
        %659 = vmatprep.subr.bf16.mxu0 0
        %660 = vmatpush1.bf16.msra.mxu0 0
        %661 = vmatprep.subr.bf16.mxu0 0
        %662 = vmatpush1.bf16.msra.mxu0 0
        %663 = vmatprep.subr.bf16.mxu0 0
        %664 = vmatpush1.bf16.msra.mxu0 0
        %665 = vmatprep.subr.bf16.mxu0 0
        %666 = vmatpush1.bf16.msra.mxu0 0
        %667 = vmatprep.subr.bf16.mxu0 0
        %668 = vmatpush1.bf16.msra.mxu0 0
        %669 = vmatprep.subr.bf16.mxu0 0
        %670 = vmatpush1.bf16.msra.mxu0 0
        %671 = vmatprep.subr.bf16.mxu0 0
        %672 = vmatpush1.bf16.msra.mxu0 %v655
        %673 = vmatprep.subr.bf16.mxu0 0
        %674 = vmatpush2.bf16.msra.mxu0 0
        %675 = vmatprep.subr.bf16.mxu0 0
        %676 = vmatpush2.bf16.msra.mxu0 0
        %677 = vmatprep.subr.bf16.mxu0 0
        %678 = vmatpush2.bf16.msra.mxu0 0
        %679 = vmatprep.subr.bf16.mxu0 0
        %680 = vmatpush2.bf16.msra.mxu0 0
        %681 = vmatprep.subr.bf16.mxu0 0
        %682 = vmatpush2.bf16.msra.mxu0 0
        %683 = vmatprep.subr.bf16.mxu0 0
        %684 = vmatpush2.bf16.msra.mxu0 0
        %685 = vmatprep.subr.bf16.mxu0 0
        %686 = vmatpush2.bf16.msra.mxu0 0
        %687 = vmatprep.subr.bf16.mxu0 0
        %688 = vmatpush2.bf16.msra.mxu0 0
        %689 = vmatprep.mubr.bf16.mxu0 0
        %690 = vmatmul.mubr.bf16.gmra.mxu0 %v651
        %v691 = vpop.f32.mrf.mxu0
        %v692 = vadd.f32 0.0, %v691
        %v693 = vpop.f32.mrf.mxu0
        %v694 = vpop.f32.mrf.mxu0
        %v695 = vpop.f32.mrf.mxu0
        %696 = vdwg.mxu0
        %v697 = vmul.f32 %v692, %v646
        %698 = vrot.lane.b32.xlu0 %v586, 120
        %v699 = vpop.permute.xlu0 %698
        %700 = vrot.lane.b32.xlu0 %v586, 88
        %v701 = vpop.permute.xlu0 %700
        %v703 = vsel %vm590, %v699, 0
        %v706 = vsel %vm590, %v701, 0
        %708 = vmatprep.subr.bf16.mxu0 0
        %709 = vmatpush1.bf16.xpose.msra.mxu0 0
        %710 = vmatprep.subr.bf16.mxu0 0
        %711 = vmatpush1.bf16.xpose.msra.mxu0 0
        %712 = vmatprep.subr.bf16.mxu0 0
        %713 = vmatpush1.bf16.xpose.msra.mxu0 0
        %714 = vmatprep.subr.bf16.mxu0 0
        %715 = vmatpush1.bf16.xpose.msra.mxu0 0
        %716 = vmatprep.subr.bf16.mxu0 0
        %717 = vmatpush1.bf16.xpose.msra.mxu0 0
        %718 = vmatprep.subr.bf16.mxu0 0
        %719 = vmatpush1.bf16.xpose.msra.mxu0 0
        %720 = vmatprep.subr.bf16.mxu0 0
        %721 = vmatpush1.bf16.xpose.msra.mxu0 0
        %722 = vmatprep.subr.bf16.mxu0 0
        %723 = vmatpush1.bf16.xpose.msra.mxu0 %v706
        %724 = vmatprep.subr.bf16.mxu0 0
        %725 = vmatpush2.bf16.xpose.msra.mxu0 0
        %726 = vmatprep.subr.bf16.mxu0 0
        %727 = vmatpush2.bf16.xpose.msra.mxu0 0
        %728 = vmatprep.subr.bf16.mxu0 0
        %729 = vmatpush2.bf16.xpose.msra.mxu0 0
        %730 = vmatprep.subr.bf16.mxu0 0
        %731 = vmatpush2.bf16.xpose.msra.mxu0 0
        %732 = vmatprep.subr.bf16.mxu0 0
        %733 = vmatpush2.bf16.xpose.msra.mxu0 0
        %734 = vmatprep.subr.bf16.mxu0 0
        %735 = vmatpush2.bf16.xpose.msra.mxu0 0
        %736 = vmatprep.subr.bf16.mxu0 0
        %737 = vmatpush2.bf16.xpose.msra.mxu0 0
        %738 = vmatprep.subr.bf16.mxu0 0
        %739 = vmatpush2.bf16.xpose.msra.mxu0 0
        %740 = vmatprep.mubr.bf16.mxu0 0
        %741 = vmatmul.mubr.bf16.gmra.mxu0 %v703
        %v742 = vpop.f32.mrf.mxu0
        %v743 = vadd.f32 0.0, %v742
        %v744 = vpop.f32.mrf.mxu0
        %v745 = vpop.f32.mrf.mxu0
        %v746 = vpop.f32.mrf.mxu0
        %747 = vdwg.mxu0
        %v748 = vsel %vm590, %v743, -inf
        %749 = vmax.xlane.f32.xlu0 %v748
        %v750 = vpop.xlane.xlu0 %749
        %v751 = vsub.f32 %v743, %v750
        %v752 = vmul.f32 %v751, 1.442695
        %v753 = vpow.pop %v752
        %v754 = vsel %vm590, %v753, 0.0
        %755 = vadd.xlane.f32.xlu0 %v754
        %v756 = vpop.xlane.xlu0 %755
        %v757 = vrcp.pop %v756
        %v758 = vpack.c.bf16 %v753, %v753
        %759 = vrot.lane.b32.xlu0 %v586, 56
        %v760 = vpop.permute.xlu0 %759
        %v762 = vsel %vm590, %v758, 0
        %v765 = vsel %vm653, %v760, 0
        %767 = vmatprep.subr.bf16.mxu0 0
        %768 = vmatpush1.bf16.msra.mxu0 0
        %769 = vmatprep.subr.bf16.mxu0 0
        %770 = vmatpush1.bf16.msra.mxu0 0
        %771 = vmatprep.subr.bf16.mxu0 0
        %772 = vmatpush1.bf16.msra.mxu0 0
        %773 = vmatprep.subr.bf16.mxu0 0
        %774 = vmatpush1.bf16.msra.mxu0 0
        %775 = vmatprep.subr.bf16.mxu0 0
        %776 = vmatpush1.bf16.msra.mxu0 0
        %777 = vmatprep.subr.bf16.mxu0 0
        %778 = vmatpush1.bf16.msra.mxu0 0
        %779 = vmatprep.subr.bf16.mxu0 0
        %780 = vmatpush1.bf16.msra.mxu0 0
        %781 = vmatprep.subr.bf16.mxu0 0
        %782 = vmatpush1.bf16.msra.mxu0 %v765
        %783 = vmatprep.subr.bf16.mxu0 0
        %784 = vmatpush2.bf16.msra.mxu0 0
        %785 = vmatprep.subr.bf16.mxu0 0
        %786 = vmatpush2.bf16.msra.mxu0 0
        %787 = vmatprep.subr.bf16.mxu0 0
        %788 = vmatpush2.bf16.msra.mxu0 0
        %789 = vmatprep.subr.bf16.mxu0 0
        %790 = vmatpush2.bf16.msra.mxu0 0
        %791 = vmatprep.subr.bf16.mxu0 0
        %792 = vmatpush2.bf16.msra.mxu0 0
        %793 = vmatprep.subr.bf16.mxu0 0
        %794 = vmatpush2.bf16.msra.mxu0 0
        %795 = vmatprep.subr.bf16.mxu0 0
        %796 = vmatpush2.bf16.msra.mxu0 0
        %797 = vmatprep.subr.bf16.mxu0 0
        %798 = vmatpush2.bf16.msra.mxu0 0
        %799 = vmatprep.mubr.bf16.mxu0 0
        %800 = vmatmul.mubr.bf16.gmra.mxu0 %v762
        %v801 = vpop.f32.mrf.mxu0
        %v802 = vadd.f32 0.0, %v801
        %v803 = vpop.f32.mrf.mxu0
        %v804 = vpop.f32.mrf.mxu0
        %v805 = vpop.f32.mrf.mxu0
        %806 = vdwg.mxu0
        %v807 = vmul.f32 %v802, %v757
        %808 = vrot.lane.b32.xlu0 %v586, 112
        %v809 = vpop.permute.xlu0 %808
        %810 = vrot.lane.b32.xlu0 %v586, 80
        %v811 = vpop.permute.xlu0 %810
        %v813 = vsel %vm590, %v809, 0
        %v816 = vsel %vm590, %v811, 0
        %818 = vmatprep.subr.bf16.mxu0 0
        %819 = vmatpush1.bf16.xpose.msra.mxu0 0
        %820 = vmatprep.subr.bf16.mxu0 0
        %821 = vmatpush1.bf16.xpose.msra.mxu0 0
        %822 = vmatprep.subr.bf16.mxu0 0
        %823 = vmatpush1.bf16.xpose.msra.mxu0 0
        %824 = vmatprep.subr.bf16.mxu0 0
        %825 = vmatpush1.bf16.xpose.msra.mxu0 0
        %826 = vmatprep.subr.bf16.mxu0 0
        %827 = vmatpush1.bf16.xpose.msra.mxu0 0
        %828 = vmatprep.subr.bf16.mxu0 0
        %829 = vmatpush1.bf16.xpose.msra.mxu0 0
        %830 = vmatprep.subr.bf16.mxu0 0
        %831 = vmatpush1.bf16.xpose.msra.mxu0 0
        %832 = vmatprep.subr.bf16.mxu0 0
        %833 = vmatpush1.bf16.xpose.msra.mxu0 %v816
        %834 = vmatprep.subr.bf16.mxu0 0
        %835 = vmatpush2.bf16.xpose.msra.mxu0 0
        %836 = vmatprep.subr.bf16.mxu0 0
        %837 = vmatpush2.bf16.xpose.msra.mxu0 0
        %838 = vmatprep.subr.bf16.mxu0 0
        %839 = vmatpush2.bf16.xpose.msra.mxu0 0
        %840 = vmatprep.subr.bf16.mxu0 0
        %841 = vmatpush2.bf16.xpose.msra.mxu0 0
        %842 = vmatprep.subr.bf16.mxu0 0
        %843 = vmatpush2.bf16.xpose.msra.mxu0 0
        %844 = vmatprep.subr.bf16.mxu0 0
        %845 = vmatpush2.bf16.xpose.msra.mxu0 0
        %846 = vmatprep.subr.bf16.mxu0 0
        %847 = vmatpush2.bf16.xpose.msra.mxu0 0
        %848 = vmatprep.subr.bf16.mxu0 0
        %849 = vmatpush2.bf16.xpose.msra.mxu0 0
        %850 = vmatprep.mubr.bf16.mxu0 0
        %851 = vmatmul.mubr.bf16.gmra.mxu0 %v813
        %v852 = vpop.f32.mrf.mxu0
        %v853 = vadd.f32 0.0, %v852
        %v854 = vpop.f32.mrf.mxu0
        %v855 = vpop.f32.mrf.mxu0
        %v856 = vpop.f32.mrf.mxu0
        %857 = vdwg.mxu0
        %v858 = vsel %vm590, %v853, -inf
        %859 = vmax.xlane.f32.xlu0 %v858
        %v860 = vpop.xlane.xlu0 %859
        %v861 = vsub.f32 %v853, %v860
        %v862 = vmul.f32 %v861, 1.442695
        %v863 = vpow.pop %v862
        %v864 = vsel %vm590, %v863, 0.0
        %865 = vadd.xlane.f32.xlu0 %v864
        %v866 = vpop.xlane.xlu0 %865
        %v867 = vrcp.pop %v866
        %v868 = vpack.c.bf16 %v863, %v863
        %869 = vrot.lane.b32.xlu0 %v586, 48
        %v870 = vpop.permute.xlu0 %869
        %v872 = vsel %vm590, %v868, 0
        %v875 = vsel %vm653, %v870, 0
        %877 = vmatprep.subr.bf16.mxu0 0
        %878 = vmatpush1.bf16.msra.mxu0 0
        %879 = vmatprep.subr.bf16.mxu0 0
        %880 = vmatpush1.bf16.msra.mxu0 0
        %881 = vmatprep.subr.bf16.mxu0 0
        %882 = vmatpush1.bf16.msra.mxu0 0
        %883 = vmatprep.subr.bf16.mxu0 0
        %884 = vmatpush1.bf16.msra.mxu0 0
        %885 = vmatprep.subr.bf16.mxu0 0
        %886 = vmatpush1.bf16.msra.mxu0 0
        %887 = vmatprep.subr.bf16.mxu0 0
        %888 = vmatpush1.bf16.msra.mxu0 0
        %889 = vmatprep.subr.bf16.mxu0 0
        %890 = vmatpush1.bf16.msra.mxu0 0
        %891 = vmatprep.subr.bf16.mxu0 0
        %892 = vmatpush1.bf16.msra.mxu0 %v875
        %893 = vmatprep.subr.bf16.mxu0 0
        %894 = vmatpush2.bf16.msra.mxu0 0
        %895 = vmatprep.subr.bf16.mxu0 0
        %896 = vmatpush2.bf16.msra.mxu0 0
        %897 = vmatprep.subr.bf16.mxu0 0
        %898 = vmatpush2.bf16.msra.mxu0 0
        %899 = vmatprep.subr.bf16.mxu0 0
        %900 = vmatpush2.bf16.msra.mxu0 0
        %901 = vmatprep.subr.bf16.mxu0 0
        %902 = vmatpush2.bf16.msra.mxu0 0
        %903 = vmatprep.subr.bf16.mxu0 0
        %904 = vmatpush2.bf16.msra.mxu0 0
        %905 = vmatprep.subr.bf16.mxu0 0
        %906 = vmatpush2.bf16.msra.mxu0 0
        %907 = vmatprep.subr.bf16.mxu0 0
        %908 = vmatpush2.bf16.msra.mxu0 0
        %909 = vmatprep.mubr.bf16.mxu0 0
        %910 = vmatmul.mubr.bf16.gmra.mxu0 %v872
        %v911 = vpop.f32.mrf.mxu0
        %v912 = vadd.f32 0.0, %v911
        %v913 = vpop.f32.mrf.mxu0
        %v914 = vpop.f32.mrf.mxu0
        %v915 = vpop.f32.mrf.mxu0
        %916 = vdwg.mxu0
        %v917 = vmul.f32 %v912, %v867
        %918 = vrot.lane.b32.xlu0 %v586, 104
        %v919 = vpop.permute.xlu0 %918
        %920 = vrot.lane.b32.xlu0 %v586, 72
        %v921 = vpop.permute.xlu0 %920
        %v923 = vsel %vm590, %v919, 0
        %v926 = vsel %vm590, %v921, 0
        %928 = vmatprep.subr.bf16.mxu0 0
        %929 = vmatpush1.bf16.xpose.msra.mxu0 0
        %930 = vmatprep.subr.bf16.mxu0 0
        %931 = vmatpush1.bf16.xpose.msra.mxu0 0
        %932 = vmatprep.subr.bf16.mxu0 0
        %933 = vmatpush1.bf16.xpose.msra.mxu0 0
        %934 = vmatprep.subr.bf16.mxu0 0
        %935 = vmatpush1.bf16.xpose.msra.mxu0 0
        %936 = vmatprep.subr.bf16.mxu0 0
        %937 = vmatpush1.bf16.xpose.msra.mxu0 0
        %938 = vmatprep.subr.bf16.mxu0 0
        %939 = vmatpush1.bf16.xpose.msra.mxu0 0
        %940 = vmatprep.subr.bf16.mxu0 0
        %941 = vmatpush1.bf16.xpose.msra.mxu0 0
        %942 = vmatprep.subr.bf16.mxu0 0
        %943 = vmatpush1.bf16.xpose.msra.mxu0 %v926
        %944 = vmatprep.subr.bf16.mxu0 0
        %945 = vmatpush2.bf16.xpose.msra.mxu0 0
        %946 = vmatprep.subr.bf16.mxu0 0
        %947 = vmatpush2.bf16.xpose.msra.mxu0 0
        %948 = vmatprep.subr.bf16.mxu0 0
        %949 = vmatpush2.bf16.xpose.msra.mxu0 0
        %950 = vmatprep.subr.bf16.mxu0 0
        %951 = vmatpush2.bf16.xpose.msra.mxu0 0
        %952 = vmatprep.subr.bf16.mxu0 0
        %953 = vmatpush2.bf16.xpose.msra.mxu0 0
        %954 = vmatprep.subr.bf16.mxu0 0
        %955 = vmatpush2.bf16.xpose.msra.mxu0 0
        %956 = vmatprep.subr.bf16.mxu0 0
        %957 = vmatpush2.bf16.xpose.msra.mxu0 0
        %958 = vmatprep.subr.bf16.mxu0 0
        %959 = vmatpush2.bf16.xpose.msra.mxu0 0
        %960 = vmatprep.mubr.bf16.mxu0 0
        %961 = vmatmul.mubr.bf16.gmra.mxu0 %v923
        %v962 = vpop.f32.mrf.mxu0
        %v963 = vadd.f32 0.0, %v962
        %v964 = vpop.f32.mrf.mxu0
        %v965 = vpop.f32.mrf.mxu0
        %v966 = vpop.f32.mrf.mxu0
        %967 = vdwg.mxu0
        %v968 = vsel %vm590, %v963, -inf
        %969 = vmax.xlane.f32.xlu0 %v968
        %v970 = vpop.xlane.xlu0 %969
        %v971 = vsub.f32 %v963, %v970
        %v972 = vmul.f32 %v971, 1.442695
        %v973 = vpow.pop %v972
        %v974 = vsel %vm590, %v973, 0.0
        %975 = vadd.xlane.f32.xlu0 %v974
        %v976 = vpop.xlane.xlu0 %975
        %v977 = vrcp.pop %v976
        %v978 = vpack.c.bf16 %v973, %v973
        %979 = vrot.lane.b32.xlu0 %v586, 40
        %v980 = vpop.permute.xlu0 %979
        %v982 = vsel %vm590, %v978, 0
        %v985 = vsel %vm653, %v980, 0
        %987 = vmatprep.subr.bf16.mxu0 0
        %988 = vmatpush1.bf16.msra.mxu0 0
        %989 = vmatprep.subr.bf16.mxu0 0
        %990 = vmatpush1.bf16.msra.mxu0 0
        %991 = vmatprep.subr.bf16.mxu0 0
        %992 = vmatpush1.bf16.msra.mxu0 0
        %993 = vmatprep.subr.bf16.mxu0 0
        %994 = vmatpush1.bf16.msra.mxu0 0
        %995 = vmatprep.subr.bf16.mxu0 0
        %996 = vmatpush1.bf16.msra.mxu0 0
        %997 = vmatprep.subr.bf16.mxu0 0
        %998 = vmatpush1.bf16.msra.mxu0 0
        %999 = vmatprep.subr.bf16.mxu0 0
        %1000 = vmatpush1.bf16.msra.mxu0 0
        %1001 = vmatprep.subr.bf16.mxu0 0
        %1002 = vmatpush1.bf16.msra.mxu0 %v985
        %1003 = vmatprep.subr.bf16.mxu0 0
        %1004 = vmatpush2.bf16.msra.mxu0 0
        %1005 = vmatprep.subr.bf16.mxu0 0
        %1006 = vmatpush2.bf16.msra.mxu0 0
        %1007 = vmatprep.subr.bf16.mxu0 0
        %1008 = vmatpush2.bf16.msra.mxu0 0
        %1009 = vmatprep.subr.bf16.mxu0 0
        %1010 = vmatpush2.bf16.msra.mxu0 0
        %1011 = vmatprep.subr.bf16.mxu0 0
        %1012 = vmatpush2.bf16.msra.mxu0 0
        %1013 = vmatprep.subr.bf16.mxu0 0
        %1014 = vmatpush2.bf16.msra.mxu0 0
        %1015 = vmatprep.subr.bf16.mxu0 0
        %1016 = vmatpush2.bf16.msra.mxu0 0
        %1017 = vmatprep.subr.bf16.mxu0 0
        %1018 = vmatpush2.bf16.msra.mxu0 0
        %1019 = vmatprep.mubr.bf16.mxu0 0
        %1020 = vmatmul.mubr.bf16.gmra.mxu0 %v982
        %v1021 = vpop.f32.mrf.mxu0
        %v1022 = vadd.f32 0.0, %v1021
        %v1023 = vpop.f32.mrf.mxu0
        %v1024 = vpop.f32.mrf.mxu0
        %v1025 = vpop.f32.mrf.mxu0
        %1026 = vdwg.mxu0
        %v1027 = vmul.f32 %v1022, %v977
        %1029 = vrot.lane.b32.xlu0 %v807, 8
        %v1030 = vpop.permute.xlu0 %1029
        %1033 = vrot.lane.b32.xlu0 %v917, 16
        %v1034 = vpop.permute.xlu0 %1033
        %1037 = vrot.lane.b32.xlu0 %v1027, 24
        %v1038 = vpop.permute.xlu0 %1037
        %v1040 = vsel %vm590, %v697, %v1030
        %vm1041 = vcmask 130048
        %v1042 = vsel %vm1041, %v1040, %v1034
        %vm1043 = vcmask 195584
        %v1044 = vsel %vm1043, %v1042, %v1038
        %v1045 = vpack.c.bf16 %v1044, %v1044
        %v1046 = vld [vmem:[%s478] sm:$0xf]
        %v1047 = vld [vmem:[%s478 + $0x4] sm:$0xf]
        %v1048 = vld [vmem:[%s478 + $0x8] sm:$0xf]
        %v1049 = vld [vmem:[%s478 + $0xc] sm:$0xf]
        %v1050 = vlaneseq
        %v1051 = vshrl.u32 %v1050, 7
        %v1052 = vsub.s32 0, %v1051
        %v1053 = vrot.slane %v585, %v1052
        %v1058 = vunpack.c.l.b16 %v1046
        %v1059 = vunpack.c.l.b16 %v1047
        %v1060 = vunpack.c.l.b16 %v1048
        %v1061 = vunpack.c.l.b16 %v1049
        %v1062 = vpack.c.b16 %v1059, %v1058
        %v1063 = vpack.c.b16 %v1061, %v1060
        %v1067 = vsel %vm541, %v1045, 0
        %1069 = vmatprep.subr.bf16.mxu0 0
        %1070 = vmatpush1.bf16.msra.mxu0 0
        %1071 = vmatprep.subr.bf16.mxu0 0
        %1072 = vmatpush1.bf16.msra.mxu0 0
        %1073 = vmatprep.subr.bf16.mxu0 0
        %1074 = vmatpush1.bf16.msra.mxu0 0
        %1075 = vmatprep.subr.bf16.mxu0 0
        %1076 = vmatpush1.bf16.msra.mxu0 0
        %1077 = vmatprep.subr.bf16.mxu0 0
        %1078 = vmatpush1.bf16.msra.mxu0 0
        %1079 = vmatprep.subr.bf16.mxu0 0
        %1080 = vmatpush1.bf16.msra.mxu0 0
        %1081 = vmatprep.subr.bf16.mxu0 0
        %1082 = vmatpush1.bf16.msra.mxu0 %v1063
        %1083 = vmatprep.subr.bf16.mxu0 0
        %1084 = vmatpush1.bf16.msra.mxu0 %v1062
        %1085 = vmatprep.subr.bf16.mxu0 0
        %1086 = vmatpush2.bf16.msra.mxu0 0
        %1087 = vmatprep.subr.bf16.mxu0 0
        %1088 = vmatpush2.bf16.msra.mxu0 0
        %1089 = vmatprep.subr.bf16.mxu0 0
        %1090 = vmatpush2.bf16.msra.mxu0 0
        %1091 = vmatprep.subr.bf16.mxu0 0
        %1092 = vmatpush2.bf16.msra.mxu0 0
        %1093 = vmatprep.subr.bf16.mxu0 0
        %1094 = vmatpush2.bf16.msra.mxu0 0
        %1095 = vmatprep.subr.bf16.mxu0 0
        %1096 = vmatpush2.bf16.msra.mxu0 0
        %1097 = vmatprep.subr.bf16.mxu0 0
        %1098 = vmatpush2.bf16.msra.mxu0 0
        %1099 = vmatprep.subr.bf16.mxu0 0
        %1100 = vmatpush2.bf16.msra.mxu0 0
        %1101 = vmatprep.mubr.bf16.mxu0 0
        %1102 = vmatmul.mubr.bf16.gmra.mxu0 %v1067
        %v1103 = vpop.f32.mrf.mxu0
        %v1104 = vadd.f32 %v1053, %v1103
        %v1105 = vpop.f32.mrf.mxu0
        %v1106 = vpop.f32.mrf.mxu0
        %v1107 = vpop.f32.mrf.mxu0
        %1108 = vdwg.mxu0
        %v1109 = vadd.f32 %v516, %v1104
        %v1110 = vsel %vm541, %v1109, 0.0
        %1111 = vadd.xlane.f32.xlu0 %v1110
        %v1112 = vpop.xlane.xlu0 %1111
        %v1113 = vrcp.pop 32.0
        %v1114 = vmul.f32 %v1112, %v1113
        %v1115 = vsub.f32 %v1109, %v1114
        %v1116 = vmul.f32 %v1115, %v1115
        %v1117 = vsel %vm541, %v1116, 0.0
        %1118 = vadd.xlane.f32.xlu0 %v1117
        %v1119 = vpop.xlane.xlu0 %1118
        %v1120 = vmul.f32 %v1119, %v1113
        %v1121 = vadd.f32 %v1120, 1e-05
        %v1122 = vrsqrt.pop %v1121
        %v1123 = vmul.f32 %v1115, %v1122
        %v1124 = vlaneseq
        %v1125 = vshrl.u32 %v1124, 7
        %v1126 = vsub.s32 1, %v1125
        %v1127 = vrot.slane %v585, %v1126
        %v1128 = vmul.f32 %v1123, %v1127
        %v1129 = vlaneseq
        %v1130 = vshrl.u32 %v1129, 7
        %v1131 = vsub.s32 2, %v1130
        %v1132 = vrot.slane %v585, %v1131
        %v1133 = vadd.f32 %v1128, %v1132
        %v1134 = vpack.c.bf16 %v1133, %v1133
        %v1135 = vld [vmem:[%s483] sm:$0xf]
        %v1136 = vld [vmem:[%s483 + $0x4] sm:$0xf]
        %v1137 = vld [vmem:[%s483 + $0x8] sm:$0xf]
        %v1138 = vld [vmem:[%s483 + $0xc] sm:$0xf]
        %v1139 = vld [vmem:[%s494] sm:$0x1]
        %v1141 = vlaneseq
        %v1142 = vshrl.u32 %v1141, 7
        %v1143 = vsub.s32 0, %v1142
        %v1144 = vrot.slane %v1139, %v1143
        %v1150 = vunpack.c.l.b16 %v1135
        %v1151 = vunpack.c.l.b16 %v1136
        %v1152 = vunpack.c.l.b16 %v1137
        %v1153 = vunpack.c.l.b16 %v1138
        %v1154 = vpack.c.b16 %v1151, %v1150
        %v1155 = vpack.c.b16 %v1153, %v1152
        %v1159 = vsel %vm541, %v1134, 0
        %1161 = vmatprep.subr.bf16.mxu0 0
        %1162 = vmatpush1.bf16.msra.mxu0 0
        %1163 = vmatprep.subr.bf16.mxu0 0
        %1164 = vmatpush1.bf16.msra.mxu0 0
        %1165 = vmatprep.subr.bf16.mxu0 0
        %1166 = vmatpush1.bf16.msra.mxu0 0
        %1167 = vmatprep.subr.bf16.mxu0 0
        %1168 = vmatpush1.bf16.msra.mxu0 0
        %1169 = vmatprep.subr.bf16.mxu0 0
        %1170 = vmatpush1.bf16.msra.mxu0 0
        %1171 = vmatprep.subr.bf16.mxu0 0
        %1172 = vmatpush1.bf16.msra.mxu0 0
        %1173 = vmatprep.subr.bf16.mxu0 0
        %1174 = vmatpush1.bf16.msra.mxu0 %v1155
        %1175 = vmatprep.subr.bf16.mxu0 0
        %1176 = vmatpush1.bf16.msra.mxu0 %v1154
        %1177 = vmatprep.subr.bf16.mxu0 0
        %1178 = vmatpush2.bf16.msra.mxu0 0
        %1179 = vmatprep.subr.bf16.mxu0 0
        %1180 = vmatpush2.bf16.msra.mxu0 0
        %1181 = vmatprep.subr.bf16.mxu0 0
        %1182 = vmatpush2.bf16.msra.mxu0 0
        %1183 = vmatprep.subr.bf16.mxu0 0
        %1184 = vmatpush2.bf16.msra.mxu0 0
        %1185 = vmatprep.subr.bf16.mxu0 0
        %1186 = vmatpush2.bf16.msra.mxu0 0
        %1187 = vmatprep.subr.bf16.mxu0 0
        %1188 = vmatpush2.bf16.msra.mxu0 0
        %1189 = vmatprep.subr.bf16.mxu0 0
        %1190 = vmatpush2.bf16.msra.mxu0 0
        %1191 = vmatprep.subr.bf16.mxu0 0
        %1192 = vmatpush2.bf16.msra.mxu0 0
        %1193 = vmatprep.mubr.bf16.mxu0 0
        %1194 = vmatmul.mubr.bf16.gmra.mxu0 %v1159
        %v1195 = vpop.f32.mrf.mxu0
        %v1196 = vadd.f32 %v1144, %v1195
        %v1197 = vpop.f32.mrf.mxu0
        %v1198 = vpop.f32.mrf.mxu0
        %v1199 = vpop.f32.mrf.mxu0
        %1200 = vdwg.mxu0
        %v1201 = vmax.f32 %v1196, 0.0
        %v1202 = vpack.c.bf16 %v1201, %v1201
        %v1203 = vld [vmem:[%s488] sm:$0xf]
        %v1204 = vld [vmem:[%s488 + $0x4] sm:$0xf]
        %v1205 = vld [vmem:[%s488 + $0x8] sm:$0xf]
        %v1206 = vld [vmem:[%s488 + $0xc] sm:$0xf]
        %v1207 = vld [vmem:[%s488 + $0x10] sm:$0xf]
        %v1208 = vld [vmem:[%s488 + $0x14] sm:$0xf]
        %v1209 = vld [vmem:[%s488 + $0x18] sm:$0xf]
        %v1210 = vld [vmem:[%s488 + $0x1c] sm:$0xf]
        %v1211 = vlaneseq
        %v1212 = vshrl.u32 %v1211, 7
        %v1213 = vsub.s32 3, %v1212
        %v1214 = vrot.slane %v585, %v1213
        %v1223 = vunpack.c.l.b16 %v1203
        %v1224 = vunpack.c.l.b16 %v1204
        %v1225 = vunpack.c.l.b16 %v1205
        %v1226 = vunpack.c.l.b16 %v1206
        %v1227 = vunpack.c.l.b16 %v1207
        %v1228 = vunpack.c.l.b16 %v1208
        %v1229 = vunpack.c.l.b16 %v1209
        %v1230 = vunpack.c.l.b16 %v1210
        %v1231 = vpack.c.b16 %v1224, %v1223
        %v1232 = vpack.c.b16 %v1226, %v1225
        %v1233 = vpack.c.b16 %v1228, %v1227
        %v1234 = vpack.c.b16 %v1230, %v1229
        %vm1239 = vcmask 523264
        %v1241 = vsel %vm1239, %v1202, 0
        %1243 = vmatprep.subr.bf16.mxu0 0
        %1244 = vmatpush1.bf16.msra.mxu0 0
        %1245 = vmatprep.subr.bf16.mxu0 0
        %1246 = vmatpush1.bf16.msra.mxu0 0
        %1247 = vmatprep.subr.bf16.mxu0 0
        %1248 = vmatpush1.bf16.msra.mxu0 0
        %1249 = vmatprep.subr.bf16.mxu0 0
        %1250 = vmatpush1.bf16.msra.mxu0 0
        %1251 = vmatprep.subr.bf16.mxu0 0
        %1252 = vmatpush1.bf16.msra.mxu0 %v1234
        %1253 = vmatprep.subr.bf16.mxu0 0
        %1254 = vmatpush1.bf16.msra.mxu0 %v1233
        %1255 = vmatprep.subr.bf16.mxu0 0
        %1256 = vmatpush1.bf16.msra.mxu0 %v1232
        %1257 = vmatprep.subr.bf16.mxu0 0
        %1258 = vmatpush1.bf16.msra.mxu0 %v1231
        %1259 = vmatprep.subr.bf16.mxu0 0
        %1260 = vmatpush2.bf16.msra.mxu0 0
        %1261 = vmatprep.subr.bf16.mxu0 0
        %1262 = vmatpush2.bf16.msra.mxu0 0
        %1263 = vmatprep.subr.bf16.mxu0 0
        %1264 = vmatpush2.bf16.msra.mxu0 0
        %1265 = vmatprep.subr.bf16.mxu0 0
        %1266 = vmatpush2.bf16.msra.mxu0 0
        %1267 = vmatprep.subr.bf16.mxu0 0
        %1268 = vmatpush2.bf16.msra.mxu0 0
        %1269 = vmatprep.subr.bf16.mxu0 0
        %1270 = vmatpush2.bf16.msra.mxu0 0
        %1271 = vmatprep.subr.bf16.mxu0 0
        %1272 = vmatpush2.bf16.msra.mxu0 0
        %1273 = vmatprep.subr.bf16.mxu0 0
        %1274 = vmatpush2.bf16.msra.mxu0 0
        %1275 = vmatprep.mubr.bf16.mxu0 0
        %1276 = vmatmul.mubr.bf16.gmra.mxu0 %v1241
        %v1277 = vpop.f32.mrf.mxu0
        %v1278 = vadd.f32 %v1214, %v1277
        %v1279 = vpop.f32.mrf.mxu0
        %v1280 = vpop.f32.mrf.mxu0
        %v1281 = vpop.f32.mrf.mxu0
        %1282 = vdwg.mxu0
        %v1283 = vadd.f32 %v1133, %v1278
        %v1284 = vsel %vm541, %v1283, 0.0
        %1285 = vadd.xlane.f32.xlu0 %v1284
        %v1286 = vpop.xlane.xlu0 %1285
        %v1287 = vmul.f32 %v1286, %v1113
        %v1288 = vsub.f32 %v1283, %v1287
        %v1289 = vmul.f32 %v1288, %v1288
        %v1290 = vsel %vm541, %v1289, 0.0
        %1291 = vadd.xlane.f32.xlu0 %v1290
        %v1292 = vpop.xlane.xlu0 %1291
        %v1293 = vmul.f32 %v1292, %v1113
        %v1294 = vadd.f32 %v1293, 1e-05
        %v1295 = vrsqrt.pop %v1294
        %v1296 = vmul.f32 %v1288, %v1295
        %v1297 = vlaneseq
        %v1298 = vshrl.u32 %v1297, 7
        %v1299 = vsub.s32 4, %v1298
        %v1300 = vrot.slane %v585, %v1299
        %v1301 = vmul.f32 %v1296, %v1300
        %v1302 = vlaneseq
        %v1303 = vshrl.u32 %v1302, 7
        %v1304 = vsub.s32 5, %v1303
        %v1305 = vrot.slane %v585, %v1304
        %v1306 = vadd.f32 %v1301, %v1305
        %1307 = vst.msk [vmem:[#allocation2] sm:$0xff] %vm541, %v1306
        %p1308 = scmp.eq.s32.totalorder %s31, 1
        // Predicated region
        $region65: #{tpu_custom_call.1} parent=55 // pred_check
          %p1309 = pneg %p1308
        $region66: #{tpu_custom_call.1} parent=55 // pred_check_branch
          %1311 = sbr.rel (%p1309) target = $region68
        $region67: #{tpu_custom_call.1} parent=55 // pred_region
          %1312 = vst.msk [vmem:[%s465] sm:$0xff] %vm541, %v1306
        $region68: #{tpu_custom_call.1} parent=55 // pred_fallthru
          _
        %s1313 = sand.u32 %s280, 1
        %s1314 = scalar_lea.sflag [#allocation5], %s1313
        %s1315 = sand.u32 %s280, 1
        %s1316 = smul.addr %s1315, 8
        %s1317 = scalar_lea.vmem [#allocation6], %s1316
        // Predicated region
        $region69: #{tpu_custom_call.1} parent=55 // pred_check
          %p1318 = pneg %p290
        $region70: #{tpu_custom_call.1} parent=55 // pred_check_branch
          %1320 = sbr.rel (%p1318) target = $region72
        $region71: #{tpu_custom_call.1} parent=55 // pred_region
          %s1322 = ssub.s32 128, 128
          %1323 = vsyncadd %s1314, %s1322
          %s1324 = smul.addr %s30, 128
          %s1325 = scalar_lea.hbm %s9, %s1324
          %s1327 = sshll.u32 %s1317, 4
          %s1328 = int_to_ptr.vmem [resolvable:$true] %s1327
          %1330 = dma.vmem_to_hbm [thread:$0]  %s1328, 128, %s1325, %s1314
        $region72: #{tpu_custom_call.1} parent=55 // pred_fallthru
          _
      $region56: #{tpu_custom_call.1} parent=5 // pred_fallthru
        _
      %p1331 = scmp.le.s32.totalorder 2, %s21
      // Predicated region
      $region73: #{tpu_custom_call.1} parent=5 // pred_check
        %p1332 = pneg %p1331
      $region74: #{tpu_custom_call.1} parent=5 // pred_check_branch
        %1334 = sbr.rel (%p1332) target = $region76
      $region75: #{tpu_custom_call.1} parent=5 // pred_region
        %s1335 = ssub.s32 %s21, 2
        // Predicated region
        $region77: #{tpu_custom_call.1} parent=75 // pred_check
          %p1336 = pneg %p296
        $region78: #{tpu_custom_call.1} parent=75 // pred_check_branch
          %1338 = sbr.rel (%p1336) target = $region80
        $region79: #{tpu_custom_call.1} parent=75 // pred_region
          %s1339 = sand.u32 %s281, 1
          %s1340 = scalar_lea.sflag [#allocation5], %s1339
          %s1341 = sand.u32 %s281, 1
          %s1342 = smul.addr %s1341, 8
          %s1343 = scalar_lea.vmem [#allocation6], %s1342
          %1344 = dma.done %s1340, 128
        $region80: #{tpu_custom_call.1} parent=75 // pred_fallthru
          _
      $region76: #{tpu_custom_call.1} parent=5 // pred_fallthru
        _
    $region6: #{tpu_custom_call.1} parent=1 // loop_footer
      %s25 = sadd.s32 1, %s21
    $region7: #{tpu_custom_call.1} parent=1 // loop_footer_branch
      %20 = sbr.rel target = $region3
    $region8: #{tpu_custom_call.1} parent=1 // loop_exit
      _
    %1345 = vsyncpa [#allocation4], 1
    %s1346 = scalar_lea.sflag [#allocation4], 1
    %1347 = vsyncpa %s1346, 1
    %1348 = vsyncpa [#allocation5], 1
    %s1349 = scalar_lea.sflag [#allocation5], 1
    %1350 = vsyncpa %s1349, 1

</llo_original>
